<compile_context>
chip_gen: v7x
topology: tpu7x:2x2x1
jax: 0.10.0
libtpu: 0.0.40
codegen_flags: <defaults>
</compile_context>

<pallas_src>
import jax
import jax.numpy as jnp
from jax.experimental import pallas as pl
from jax.experimental.pallas import tpu as pltpu


LANE = 128                 # last-dim (lane) granularity
SUBLANE = 8                # second-to-last-dim (sublane) granularity
_STEP_OVERHEAD_ROWS = 32   # ~0.35us per grid step, expressed in row-equivalents


def _round_up(x, m):
    return ((x + m - 1) // m) * m


def _vmem_capacity_bytes():
    """Generation-aware VMEM capacity (64 MiB/TC on v7x, 128 MiB on v5e/v6e)."""
    try:
        return int(pltpu.get_tpu_info().vmem_capacity_bytes)
    except Exception:
        return 64 << 20    # conservative fallback (v7x per-TensorCore size)


def _choose_tm(batch, block_m):
    """Pick a batch tile: large enough to amortize per-step overhead and fill
    the MXU M dim, small enough to (a) avoid excessive batch padding and
    (b) give the grid >= 2 steps so both v7x TensorCores get work."""
    batch = max(int(batch), 1)
    b_sub = _round_up(batch, SUBLANE)
    block_m = max(_round_up(block_m, SUBLANE), SUBLANE)

    cands = set()
    t = SUBLANE
    while t < block_m:
        cands.add(min(t, b_sub))
        t *= 2
    cands.add(min(block_m, b_sub))

    best_key, best_tm = None, None
    for tm in sorted(cands):
        b_pad = _round_up(batch, tm)
        n_tiles = b_pad // tm
        cost = b_pad + n_tiles * _STEP_OVERHEAD_ROWS   # padded rows + step overhead
        key = (0 if n_tiles >= 2 else 1, cost, -tm)    # prefer >=2 tiles (megacore)
        if best_key is None or key < best_key:
            best_key, best_tm = key, tm
    return best_tm


def _pick_feature_tile(dim, cap=512):
    """Largest multiple of LANE <= cap that divides `dim` (dim is LANE-padded)."""
    t = min(cap, dim)
    t = (t // LANE) * LANE
    t = max(t, LANE)
    while t > LANE and dim % t:
        t -= LANE
    return t


# ------------------------------ kernels ------------------------------------ #
def _make_fused_kernel(num_layers, activation, compute_dtype):
    """Fused MLP kernel. Ref order: (x_ref, w0, b0, w1, b1, ..., o_ref)."""

    def kernel(*refs):
        x_ref = refs[0]
        o_ref = refs[-1]
        wb = refs[1:-1]

        h = x_ref[...]                                   # compute dtype (bf16 fast path)
        for layer in range(num_layers):
            w = wb[2 * layer][...]                       # [in_p, out_p], compute dtype
            b = wb[2 * layer + 1][...]                   # [1, out_p], f32
            acc = jnp.dot(h, w, preferred_element_type=jnp.float32) + b
            if layer < num_layers - 1:
                h = activation(acc).astype(compute_dtype)
            else:
                o_ref[...] = acc.astype(o_ref.dtype)

    return kernel


def _make_linear_kernel(apply_act, activation):
    """Single Linear layer with K-tiled accumulation (fallback path)."""

    def kernel(x_ref, w_ref, b_ref, o_ref, acc_ref):
        @pl.when(pl.program_id(2) == 0)
        def _():
            acc_ref[...] = jnp.zeros_like(acc_ref)

        acc_ref[...] += jnp.dot(x_ref[...], w_ref[...],
                                preferred_element_type=jnp.float32)

        @pl.when(pl.program_id(2) == pl.num_programs(2) - 1)
        def _():
            out = acc_ref[...] + b_ref[...]
            if apply_act:
                out = activation(out)
            o_ref[...] = out.astype(o_ref.dtype)

    return kernel


# ------------------------------ module wrapper ------------------------------ #
class PallasMLP:
    """Fused MLP forward pass (matches the torch module's forward semantics).

    weights[i]: [in_d, out_d] (transposed vs. torch Linear's [out, in])
    biases[i]:  [out_d] or [1, out_d]
    activation: must be elementwise (see padding-exactness note above).
    compute_dtype: e.g. jnp.bfloat16 for the MXU fast path (f32 accumulation,
                   output stays in the input's dtype).
    """

    def __init__(self, weights, biases, activation=jax.nn.relu, *,
                 compute_dtype=None, block_m=512, force_tiled=False,
                 vmem_fraction=0.85):
        assert len(weights) == len(biases) >= 1
        self.num_layers = len(weights)
        self.activation = activation
        self.block_m = int(block_m)
        self.force_tiled = bool(force_tiled)

        self.in_dim = int(weights[0].shape[0])
        self.out_dim = int(weights[-1].shape[1])
        self.compute_dtype = jnp.dtype(compute_dtype) if compute_dtype is not None \
            else jnp.dtype(jnp.asarray(weights[0]).dtype)

        dims = [self.in_dim] + [int(w.shape[1]) for w in weights]
        self.dims = dims
        self.pdims = [_round_up(d, LANE) for d in dims]

        self._vmem_cap = _vmem_capacity_bytes()
        self._vmem_budget = int(vmem_fraction * self._vmem_cap)

        # ---- pre-pad parameters ONCE (hoisted out of the forward path) ----
        self._w_pad, self._b_pad = [], []
        for i, (w, b) in enumerate(zip(weights, biases)):
            w = jnp.asarray(w, dtype=self.compute_dtype)
            assert w.shape == (dims[i], dims[i + 1])
            self._w_pad.append(jnp.pad(
                w, ((0, self.pdims[i] - dims[i]),
                    (0, self.pdims[i + 1] - dims[i + 1]))))
            b2 = jnp.reshape(jnp.asarray(b, dtype=jnp.float32), (1, dims[i + 1]))
            self._b_pad.append(jnp.pad(
                b2, ((0, 0), (0, self.pdims[i + 1] - dims[i + 1]))))

        # fused-path buffering mode, resolved lazily on the first call:
        #   None -> unknown, "single" -> Buffered(1) resident weights,
        #   "double" -> default buffering, "tiled" -> per-layer fallback.
        self._fused_mode = None

    # ------------------------------ forward -------------------------------- #
    def __call__(self, x):
        x = jnp.asarray(x)
        orig_shape = x.shape
        assert orig_shape[-1] == self.in_dim, "last dim must equal input_dim"
        x2 = x.reshape(-1, self.in_dim)
        out_dtype = x.dtype
        B = x2.shape[0]
        pdims = self.pdims

        tm = _choose_tm(B, self.block_m)
        B_pad = _round_up(B, tm)
        n_tiles = B_pad // tm

        x_p = jnp.pad(x2.astype(self.compute_dtype),
                      ((0, B_pad - B), (0, pdims[0] - self.in_dim)))

        # ---- VMEM accounting (single-buffered resident weights) ----
        c_bytes = jnp.dtype(self.compute_dtype).itemsize
        o_bytes = jnp.dtype(out_dtype).itemsize
        w_bytes = sum(pdims[i] * pdims[i + 1] for i in range(self.num_layers)) * c_bytes
        b_bytes = sum(pdims[1:]) * 4
        stream_bytes = 2 * tm * (pdims[0] * c_bytes + pdims[-1] * o_bytes)  # x/out dbl-buf
        scratch_bytes = 2 * tm * max(pdims) * 4                             # f32 h + acc
        need_single = w_bytes + b_bytes + stream_bytes + scratch_bytes

        if self.force_tiled or self._fused_mode == "tiled" or need_single > self._vmem_budget:
            out_p = self._tiled_forward(x_p, tm, out_dtype)
        else:
            out_p = self._fused_dispatch(x_p, tm, n_tiles, out_dtype,
                                         need_single, w_bytes + b_bytes)

        out = out_p[:B, :self.out_dim]
        return out.reshape(orig_shape[:-1] + (self.out_dim,))

    # ---------------------------- fused path ------------------------------- #
    def _fused_dispatch(self, x_p, tm, n_tiles, out_dtype, need_single, wb_bytes):
        if self._fused_mode == "single":
            return self._fused_forward(x_p, tm, n_tiles, out_dtype, True, need_single)
        if self._fused_mode == "double":
            return self._fused_forward(x_p, tm, n_tiles, out_dtype, False,
                                       need_single + wb_bytes)
        # First call: probe single-buffered resident weights, then default
        # buffering, then the tiled fallback.
        try:
            out = self._fused_forward(x_p, tm, n_tiles, out_dtype, True, need_single)
            self._fused_mode = "single"
            return out
        except Exception:
            pass
        try:
            out = self._fused_forward(x_p, tm, n_tiles, out_dtype, False,
                                      need_single + wb_bytes)
            self._fused_mode = "double"
            return out
        except Exception:
            self._fused_mode = "tiled"
            return self._tiled_forward(x_p, tm, out_dtype)

    def _fused_forward(self, x_p, tm, n_tiles, out_dtype, single_buffer_weights,
                       vmem_need):
        pdims = self.pdims
        L = self.num_layers
        B_pad = x_p.shape[0]

        wb_kwargs = {}
        if single_buffer_weights:
            # Block-invariant (constant index_map) weights/biases: one VMEM copy.
            wb_kwargs = dict(pipeline_mode=pl.Buffered(1))

        # x/out stream over the batch grid; weights/biases stay VMEM-resident.
        # TODO(synk): if profiling on v5e shows the x DMA exposed for very
        # narrow MLPs, deepen the x BlockSpec to pl.Buffered(3).
        args = [x_p]
        in_specs = [pl.BlockSpec((tm, pdims[0]), lambda i: (i, 0))]
        for li in range(L):
            args.append(self._w_pad[li])
            in_specs.append(pl.BlockSpec((pdims[li], pdims[li + 1]),
                                         lambda i: (0, 0), **wb_kwargs))
            args.append(self._b_pad[li])
            in_specs.append(pl.BlockSpec((1, pdims[li + 1]),
                                         lambda i: (0, 0), **wb_kwargs))

        out_shape = jax.ShapeDtypeStruct((B_pad, pdims[-1]), out_dtype)
        out_spec = pl.BlockSpec((tm, pdims[-1]), lambda i: (i, 0))

        vmem_limit = int(min(max(int(vmem_need * 1.5), 16 << 20), self._vmem_budget))

        c_bytes = jnp.dtype(self.compute_dtype).itemsize
        wsum = sum(pdims[i] * pdims[i + 1] for i in range(L))
        cost = pl.CostEstimate(
            flops=2 * B_pad * wsum,
            transcendentals=0,
            bytes_accessed=int(
                B_pad * (pdims[0] * c_bytes + pdims[-1] * jnp.dtype(out_dtype).itemsize)
                + wsum * c_bytes + sum(pdims[1:]) * 4),
        )

        kernel = _make_fused_kernel(L, self.activation, self.compute_dtype)
        return pl.pallas_call(
            kernel,
            out_shape=out_shape,
            grid=(n_tiles,),
            in_specs=in_specs,
            out_specs=out_spec,
            compiler_params=pltpu.CompilerParams(
                dimension_semantics=("parallel",),   # megacore sharding on v7x
                vmem_limit_bytes=vmem_limit,
            ),
            cost_estimate=cost,
        )(*args)

    # --------------------------- tiled fallback ---------------------------- #
    def _tiled_forward(self, x_p, tm, out_dtype):
        h = x_p
        for li in range(self.num_layers):
            last = li == self.num_layers - 1
            h = self._tiled_linear(
                h, self._w_pad[li], self._b_pad[li],
                apply_act=not last,
                out_dtype=out_dtype if last else self.compute_dtype,
                tm=tm)
        return h

    def _tiled_linear(self, x_p, w_p, b_p, *, apply_act, out_dtype, tm):
        M, K = x_p.shape
        K2, N = w_p.shape
        assert K == K2
        tk = _pick_feature_tile(K)
        tn = _pick_feature_tile(N)
        grid = (M // tm, N // tn, K // tk)

        kernel = _make_linear_kernel(apply_act, self.activation)
        return pl.pallas_call(
            kernel,
            out_shape=jax.ShapeDtypeStruct((M, N), out_dtype),
            grid=grid,
            in_specs=[
                pl.BlockSpec((tm, tk), lambda i, j, k: (i, k)),
                pl.BlockSpec((tk, tn), lambda i, j, k: (k, j)),
                pl.BlockSpec((1, tn), lambda i, j, k: (0, j)),
            ],
            out_specs=pl.BlockSpec((tm, tn), lambda i, j, k: (i, j)),
            scratch_shapes=[pltpu.VMEM((tm, tn), jnp.float32)],
            compiler_params=pltpu.CompilerParams(
                dimension_semantics=("parallel", "parallel", "arbitrary"),
            ),
        )(x_p, w_p, b_p)


# -------------------- deterministic parameter init ------------------------- #
def _orthogonal(key, out_dim, in_dim, gain=1.0, dtype=jnp.float32):
    """Deterministic orthogonal init (mirrors torch.nn.init.orthogonal_)."""
    rows, cols = out_dim, in_dim
    big, small = max(rows, cols), min(rows, cols)
    a = jax.random.normal(key, (big, small), dtype=jnp.float32)
    q, r = jnp.linalg.qr(a)
    d = jnp.sign(jnp.diagonal(r))
    q = q * d[None, :]
    if rows < cols:
        q = q.T
    return (gain * q[:rows, :cols]).astype(dtype)


def init_mlp_params(key, input_dim, output_dim, hid_dims):
    """(weights, biases) matching MLP.__init__ + weight_init.

    torch stores Linear weight as [out, in]; we return the transposed
    [in, out] version used by the kernel. Biases are zero ([1, out])."""
    dims = [input_dim] + list(hid_dims) + [output_dim]
    weights, biases = [], []
    for i in range(len(dims) - 1):
        key, sub = jax.random.split(key)
        w_torch = _orthogonal(sub, dims[i + 1], dims[i], gain=1.0)  # [out, in]
        weights.append(jnp.asarray(w_torch.T))                      # [in, out]
        biases.append(jnp.zeros((1, dims[i + 1]), dtype=jnp.float32))
    return weights, biases


# ---------------------------- pure-JAX reference --------------------------- #
def mlp_reference(x, weights, biases, activation=jax.nn.relu):
    out = x
    for i, (w, b) in enumerate(zip(weights, biases)):
        out = out @ w + jnp.reshape(b, (1, -1))
        if i < len(weights) - 1:
            out = activation(out)
    return out


if __name__ == "__main__":
    key = jax.random.PRNGKey(0)

    # MLP(input_dim=16, output_dim=8, hid_dims=[32, 32]), relu activation
    # (config.policy_activation = 'relu').
    batch, input_dim, output_dim = 8, 16, 8
    hid_dims = [32, 32]

    key, pkey, xkey = jax.random.split(key, 3)
    weights, biases = init_mlp_params(pkey, input_dim, output_dim, hid_dims)
    x = jax.random.normal(xkey, (batch, input_dim), dtype=jnp.float32)
    ref = mlp_reference(x, weights, biases, activation=jax.nn.relu)

    # 1) fused f32 path, small batch.
    mlp = PallasMLP(weights, biases, activation=jax.nn.relu)
    out = jax.block_until_ready(mlp(x))
    assert out.shape == (batch, output_dim)
    assert jnp.allclose(out, ref, atol=1e-5, rtol=1e-5), "mismatch (fused, f32)"

    # 2) fused f32 path, batch=300: exercises padding-aware tm selection
    #    (tm=128 -> 3 tiles instead of padding 300 -> 512) and batch padding.
    key, xkey2 = jax.random.split(key)
    x_big = jax.random.normal(xkey2, (300, input_dim), dtype=jnp.float32)
    out_big = jax.block_until_ready(mlp(x_big))
    ref_big = mlp_reference(x_big, weights, biases, activation=jax.nn.relu)
    assert out_big.shape == (300, output_dim)
    assert jnp.allclose(out_big, ref_big, atol=1e-5, rtol=1e-5), "mismatch (big)"

    # 3) bf16 compute path (f32 accumulation / f32 output), loose tolerance.
    key, xkey3 = jax.random.split(key)
    x_mid = jax.random.normal(xkey3, (64, input_dim), dtype=jnp.float32)
    mlp_bf16 = PallasMLP(weights, biases, activation=jax.nn.relu,
                         compute_dtype=jnp.bfloat16)
    out_bf16 = jax.block_until_ready(mlp_bf16(x_mid))
    ref_mid = mlp_reference(x_mid, weights, biases, activation=jax.nn.relu)
    assert out_bf16.shape == (64, output_dim)
    assert out_bf16.dtype == jnp.float32
    assert jnp.allclose(out_bf16, ref_mid, atol=1e-1, rtol=1e-1), "mismatch (bf16)"

    # 4) K/N-tiled per-layer fallback (forced) — the path wide MLPs take when
    #    resident padded weights would exceed the per-generation VMEM budget.
    mlp_tiled = PallasMLP(weights, biases, activation=jax.nn.relu, force_tiled=True)
    out_tiled = jax.block_until_ready(mlp_tiled(x_big))
    assert out_tiled.shape == (300, output_dim)
    assert jnp.allclose(out_tiled, ref_big, atol=1e-5, rtol=1e-5), "mismatch (tiled)"

    print("KERNEL_OK")
</pallas_src>

<mosaic_0001>
module attributes {stable_mosaic.version = 11 : i64} {
  func.func @kernel(%arg0: i32, %arg1: memref<8x128xf32, #tpu.memory_space<vmem>>, %arg2: memref<128x128xf32, #tpu.memory_space<vmem>>, %arg3: memref<1x128xf32, #tpu.memory_space<vmem>>, %arg4: memref<128x128xf32, #tpu.memory_space<vmem>>, %arg5: memref<1x128xf32, #tpu.memory_space<vmem>>, %arg6: memref<128x128xf32, #tpu.memory_space<vmem>>, %arg7: memref<1x128xf32, #tpu.memory_space<vmem>>, %arg8: memref<8x128xf32, #tpu.memory_space<vmem>>) attributes {dimension_semantics = [#tpu.dimension_semantics<parallel>], iteration_bounds = array<i64: 1>, scalar_prefetch = 0 : i64, scratch_operands = 0 : i64, tpu.core_type = #tpu.core_type<tc>, window_params = [{transform_indices = @transform_0, window_bounds = array<i64: 8, 128>}, {pipeline_mode = #tpu.pipeline_mode<synchronous>, transform_indices = @transform_1, window_bounds = array<i64: 128, 128>}, {pipeline_mode = #tpu.pipeline_mode<synchronous>, transform_indices = @transform_2, window_bounds = array<i64: 1, 128>}, {pipeline_mode = #tpu.pipeline_mode<synchronous>, transform_indices = @transform_3, window_bounds = array<i64: 128, 128>}, {pipeline_mode = #tpu.pipeline_mode<synchronous>, transform_indices = @transform_4, window_bounds = array<i64: 1, 128>}, {pipeline_mode = #tpu.pipeline_mode<synchronous>, transform_indices = @transform_5, window_bounds = array<i64: 128, 128>}, {pipeline_mode = #tpu.pipeline_mode<synchronous>, transform_indices = @transform_6, window_bounds = array<i64: 1, 128>}, {transform_indices = @transform_7, window_bounds = array<i64: 8, 128>}]} {
    %c0 = arith.constant 0 : index
    %c0_0 = arith.constant 0 : index
    %0 = vector.load %arg1[%c0, %c0_0] : memref<8x128xf32, #tpu.memory_space<vmem>>, vector<8x128xf32>
    %c0_1 = arith.constant 0 : index
    %c0_2 = arith.constant 0 : index
    %1 = vector.load %arg2[%c0_1, %c0_2] : memref<128x128xf32, #tpu.memory_space<vmem>>, vector<128x128xf32>
    %c0_3 = arith.constant 0 : index
    %c0_4 = arith.constant 0 : index
    %2 = vector.load %arg3[%c0_3, %c0_4] : memref<1x128xf32, #tpu.memory_space<vmem>>, vector<1x128xf32>
    %cst = arith.constant dense<0.000000e+00> : vector<8x128xf32>
    %3 = tpu.matmul %0, %1, %cst {dimension_numbers = #tpu.dot_dimension_numbers<[1], [0], [0], [1], [0, 0, 1, 1], [], []>} : vector<8x128xf32>, vector<128x128xf32>, vector<8x128xf32> -> vector<8x128xf32>
    %4 = vector.broadcast %2 : vector<1x128xf32> to vector<8x128xf32>
    %5 = arith.addf %3, %4 : vector<8x128xf32>
    %cst_5 = arith.constant 0.000000e+00 : f32
    %6 = vector.broadcast %cst_5 : f32 to vector<8x128xf32>
    %7 = arith.maximumf %5, %6 : vector<8x128xf32>
    %c0_6 = arith.constant 0 : index
    %c0_7 = arith.constant 0 : index
    %8 = vector.load %arg4[%c0_6, %c0_7] : memref<128x128xf32, #tpu.memory_space<vmem>>, vector<128x128xf32>
    %c0_8 = arith.constant 0 : index
    %c0_9 = arith.constant 0 : index
    %9 = vector.load %arg5[%c0_8, %c0_9] : memref<1x128xf32, #tpu.memory_space<vmem>>, vector<1x128xf32>
    %cst_10 = arith.constant dense<0.000000e+00> : vector<8x128xf32>
    %10 = tpu.matmul %7, %8, %cst_10 {dimension_numbers = #tpu.dot_dimension_numbers<[1], [0], [0], [1], [0, 0, 1, 1], [], []>} : vector<8x128xf32>, vector<128x128xf32>, vector<8x128xf32> -> vector<8x128xf32>
    %11 = vector.broadcast %9 : vector<1x128xf32> to vector<8x128xf32>
    %12 = arith.addf %10, %11 : vector<8x128xf32>
    %cst_11 = arith.constant 0.000000e+00 : f32
    %13 = vector.broadcast %cst_11 : f32 to vector<8x128xf32>
    %14 = arith.maximumf %12, %13 : vector<8x128xf32>
    %c0_12 = arith.constant 0 : index
    %c0_13 = arith.constant 0 : index
    %15 = vector.load %arg6[%c0_12, %c0_13] : memref<128x128xf32, #tpu.memory_space<vmem>>, vector<128x128xf32>
    %c0_14 = arith.constant 0 : index
    %c0_15 = arith.constant 0 : index
    %16 = vector.load %arg7[%c0_14, %c0_15] : memref<1x128xf32, #tpu.memory_space<vmem>>, vector<1x128xf32>
    %cst_16 = arith.constant dense<0.000000e+00> : vector<8x128xf32>
    %17 = tpu.matmul %14, %15, %cst_16 {dimension_numbers = #tpu.dot_dimension_numbers<[1], [0], [0], [1], [0, 0, 1, 1], [], []>} : vector<8x128xf32>, vector<128x128xf32>, vector<8x128xf32> -> vector<8x128xf32>
    %18 = vector.broadcast %16 : vector<1x128xf32> to vector<8x128xf32>
    %19 = arith.addf %17, %18 : vector<8x128xf32>
    %c0_17 = arith.constant 0 : index
    %c0_18 = arith.constant 0 : index
    %20 = vector.load %arg8[%c0_17, %c0_18] : memref<8x128xf32, #tpu.memory_space<vmem>>, vector<8x128xf32>
    tpu.vector_store %arg8[%c0_17, %c0_18], %19 {strides = array<i32>} : memref<8x128xf32, #tpu.memory_space<vmem>>, vector<8x128xf32>,
    return
  }
  func.func @transform_0(%arg0: i32) -> (i32, i32) {
    %c0_i32 = arith.constant 0 : i32
    %c0_i32_0 = arith.constant 0 : i32
    return %arg0, %c0_i32 : i32, i32
  }
  func.func @transform_1(%arg0: i32) -> (i32, i32) {
    %c0_i32 = arith.constant 0 : i32
    %c0_i32_0 = arith.constant 0 : i32
    %c0_i32_1 = arith.constant 0 : i32
    return %c0_i32, %c0_i32_0 : i32, i32
  }
  func.func @transform_2(%arg0: i32) -> (i32, i32) {
    %c0_i32 = arith.constant 0 : i32
    %c0_i32_0 = arith.constant 0 : i32
    %c0_i32_1 = arith.constant 0 : i32
    return %c0_i32, %c0_i32_0 : i32, i32
  }
  func.func @transform_3(%arg0: i32) -> (i32, i32) {
    %c0_i32 = arith.constant 0 : i32
    %c0_i32_0 = arith.constant 0 : i32
    %c0_i32_1 = arith.constant 0 : i32
    return %c0_i32, %c0_i32_0 : i32, i32
  }
  func.func @transform_4(%arg0: i32) -> (i32, i32) {
    %c0_i32 = arith.constant 0 : i32
    %c0_i32_0 = arith.constant 0 : i32
    %c0_i32_1 = arith.constant 0 : i32
    return %c0_i32, %c0_i32_0 : i32, i32
  }
  func.func @transform_5(%arg0: i32) -> (i32, i32) {
    %c0_i32 = arith.constant 0 : i32
    %c0_i32_0 = arith.constant 0 : i32
    %c0_i32_1 = arith.constant 0 : i32
    return %c0_i32, %c0_i32_0 : i32, i32
  }
  func.func @transform_6(%arg0: i32) -> (i32, i32) {
    %c0_i32 = arith.constant 0 : i32
    %c0_i32_0 = arith.constant 0 : i32
    %c0_i32_1 = arith.constant 0 : i32
    return %c0_i32, %c0_i32_0 : i32, i32
  }
  func.func @transform_7(%arg0: i32) -> (i32, i32) {
    %c0_i32 = arith.constant 0 : i32
    %c0_i32_0 = arith.constant 0 : i32
    return %arg0, %c0_i32 : i32, i32
  }
}

module attributes {stable_mosaic.version = 11 : i64} {
  func.func @kernel(%arg0: i32, %arg1: memref<8x128xf32, #tpu.memory_space<vmem>>, %arg2: memref<128x128xf32, #tpu.memory_space<vmem>>, %arg3: memref<1x128xf32, #tpu.memory_space<vmem>>, %arg4: memref<128x128xf32, #tpu.memory_space<vmem>>, %arg5: memref<1x128xf32, #tpu.memory_space<vmem>>, %arg6: memref<128x128xf32, #tpu.memory_space<vmem>>, %arg7: memref<1x128xf32, #tpu.memory_space<vmem>>, %arg8: memref<8x128xf32, #tpu.memory_space<vmem>>) attributes {dimension_semantics = [#tpu.dimension_semantics<parallel>], iteration_bounds = array<i64: 1>, scalar_prefetch = 0 : i64, scratch_operands = 0 : i64, tpu.core_type = #tpu.core_type<tc>, window_params = [{transform_indices = @transform_0, window_bounds = array<i64: 8, 128>}, {pipeline_mode = #tpu.pipeline_mode<synchronous>, transform_indices = @transform_1, window_bounds = array<i64: 128, 128>}, {pipeline_mode = #tpu.pipeline_mode<synchronous>, transform_indices = @transform_2, window_bounds = array<i64: 1, 128>}, {pipeline_mode = #tpu.pipeline_mode<synchronous>, transform_indices = @transform_3, window_bounds = array<i64: 128, 128>}, {pipeline_mode = #tpu.pipeline_mode<synchronous>, transform_indices = @transform_4, window_bounds = array<i64: 1, 128>}, {pipeline_mode = #tpu.pipeline_mode<synchronous>, transform_indices = @transform_5, window_bounds = array<i64: 128, 128>}, {pipeline_mode = #tpu.pipeline_mode<synchronous>, transform_indices = @transform_6, window_bounds = array<i64: 1, 128>}, {transform_indices = @transform_7, window_bounds = array<i64: 8, 128>}]} {
    %c0 = arith.constant 0 : index
    %c0_0 = arith.constant 0 : index
    %0 = vector.load %arg1[%c0, %c0_0] : memref<8x128xf32, #tpu.memory_space<vmem>>, vector<8x128xf32>
    %c0_1 = arith.constant 0 : index
    %c0_2 = arith.constant 0 : index
    %1 = vector.load %arg2[%c0_1, %c0_2] : memref<128x128xf32, #tpu.memory_space<vmem>>, vector<128x128xf32>
    %c0_3 = arith.constant 0 : index
    %c0_4 = arith.constant 0 : index
    %2 = vector.load %arg3[%c0_3, %c0_4] : memref<1x128xf32, #tpu.memory_space<vmem>>, vector<1x128xf32>
    %cst = arith.constant dense<0.000000e+00> : vector<8x128xf32>
    %3 = tpu.matmul %0, %1, %cst {dimension_numbers = #tpu.dot_dimension_numbers<[1], [0], [0], [1], [0, 0, 1, 1], [], []>} : vector<8x128xf32>, vector<128x128xf32>, vector<8x128xf32> -> vector<8x128xf32>
    %4 = vector.broadcast %2 : vector<1x128xf32> to vector<8x128xf32>
    %5 = arith.addf %3, %4 : vector<8x128xf32>
    %cst_5 = arith.constant 0.000000e+00 : f32
    %6 = vector.broadcast %cst_5 : f32 to vector<8x128xf32>
    %7 = arith.maximumf %5, %6 : vector<8x128xf32>
    %c0_6 = arith.constant 0 : index
    %c0_7 = arith.constant 0 : index
    %8 = vector.load %arg4[%c0_6, %c0_7] : memref<128x128xf32, #tpu.memory_space<vmem>>, vector<128x128xf32>
    %c0_8 = arith.constant 0 : index
    %c0_9 = arith.constant 0 : index
    %9 = vector.load %arg5[%c0_8, %c0_9] : memref<1x128xf32, #tpu.memory_space<vmem>>, vector<1x128xf32>
    %cst_10 = arith.constant dense<0.000000e+00> : vector<8x128xf32>
    %10 = tpu.matmul %7, %8, %cst_10 {dimension_numbers = #tpu.dot_dimension_numbers<[1], [0], [0], [1], [0, 0, 1, 1], [], []>} : vector<8x128xf32>, vector<128x128xf32>, vector<8x128xf32> -> vector<8x128xf32>
    %11 = vector.broadcast %9 : vector<1x128xf32> to vector<8x128xf32>
    %12 = arith.addf %10, %11 : vector<8x128xf32>
    %cst_11 = arith.constant 0.000000e+00 : f32
    %13 = vector.broadcast %cst_11 : f32 to vector<8x128xf32>
    %14 = arith.maximumf %12, %13 : vector<8x128xf32>
    %c0_12 = arith.constant 0 : index
    %c0_13 = arith.constant 0 : index
    %15 = vector.load %arg6[%c0_12, %c0_13] : memref<128x128xf32, #tpu.memory_space<vmem>>, vector<128x128xf32>
    %c0_14 = arith.constant 0 : index
    %c0_15 = arith.constant 0 : index
    %16 = vector.load %arg7[%c0_14, %c0_15] : memref<1x128xf32, #tpu.memory_space<vmem>>, vector<1x128xf32>
    %cst_16 = arith.constant dense<0.000000e+00> : vector<8x128xf32>
    %17 = tpu.matmul %14, %15, %cst_16 {dimension_numbers = #tpu.dot_dimension_numbers<[1], [0], [0], [1], [0, 0, 1, 1], [], []>} : vector<8x128xf32>, vector<128x128xf32>, vector<8x128xf32> -> vector<8x128xf32>
    %18 = vector.broadcast %16 : vector<1x128xf32> to vector<8x128xf32>
    %19 = arith.addf %17, %18 : vector<8x128xf32>
    %c0_17 = arith.constant 0 : index
    %c0_18 = arith.constant 0 : index
    %20 = vector.load %arg8[%c0_17, %c0_18] : memref<8x128xf32, #tpu.memory_space<vmem>>, vector<8x128xf32>
    tpu.vector_store %arg8[%c0_17, %c0_18], %19 {strides = array<i32>} : memref<8x128xf32, #tpu.memory_space<vmem>>, vector<8x128xf32>,
    return
  }
  func.func @transform_0(%arg0: i32) -> (i32, i32) {
    %c0_i32 = arith.constant 0 : i32
    %c0_i32_0 = arith.constant 0 : i32
    return %arg0, %c0_i32 : i32, i32
  }
  func.func @transform_1(%arg0: i32) -> (i32, i32) {
    %c0_i32 = arith.constant 0 : i32
    %c0_i32_0 = arith.constant 0 : i32
    %c0_i32_1 = arith.constant 0 : i32
    return %c0_i32, %c0_i32_0 : i32, i32
  }
  func.func @transform_2(%arg0: i32) -> (i32, i32) {
    %c0_i32 = arith.constant 0 : i32
    %c0_i32_0 = arith.constant 0 : i32
    %c0_i32_1 = arith.constant 0 : i32
    return %c0_i32, %c0_i32_0 : i32, i32
  }
  func.func @transform_3(%arg0: i32) -> (i32, i32) {
    %c0_i32 = arith.constant 0 : i32
    %c0_i32_0 = arith.constant 0 : i32
    %c0_i32_1 = arith.constant 0 : i32
    return %c0_i32, %c0_i32_0 : i32, i32
  }
  func.func @transform_4(%arg0: i32) -> (i32, i32) {
    %c0_i32 = arith.constant 0 : i32
    %c0_i32_0 = arith.constant 0 : i32
    %c0_i32_1 = arith.constant 0 : i32
    return %c0_i32, %c0_i32_0 : i32, i32
  }
  func.func @transform_5(%arg0: i32) -> (i32, i32) {
    %c0_i32 = arith.constant 0 : i32
    %c0_i32_0 = arith.constant 0 : i32
    %c0_i32_1 = arith.constant 0 : i32
    return %c0_i32, %c0_i32_0 : i32, i32
  }
  func.func @transform_6(%arg0: i32) -> (i32, i32) {
    %c0_i32 = arith.constant 0 : i32
    %c0_i32_0 = arith.constant 0 : i32
    %c0_i32_1 = arith.constant 0 : i32
    return %c0_i32, %c0_i32_0 : i32, i32
  }
  func.func @transform_7(%arg0: i32) -> (i32, i32) {
    %c0_i32 = arith.constant 0 : i32
    %c0_i32_0 = arith.constant 0 : i32
    return %arg0, %c0_i32 : i32, i32
  }
}

module attributes {stable_mosaic.version = 11 : i64} {
  func.func @kernel(%arg0: i32, %arg1: i32, %arg2: i32, %arg3: memref<8x128xf32, #tpu.memory_space<vmem>>, %arg4: memref<128x128xf32, #tpu.memory_space<vmem>>, %arg5: memref<1x128xf32, #tpu.memory_space<vmem>>, %arg6: memref<8x128xf32, #tpu.memory_space<vmem>>, %arg7: memref<8x128xf32, #tpu.memory_space<vmem>>) attributes {dimension_semantics = [#tpu.dimension_semantics<parallel>, #tpu.dimension_semantics<parallel>, #tpu.dimension_semantics<arbitrary>], iteration_bounds = array<i64: 1, 1, 1>, scalar_prefetch = 0 : i64, scratch_operands = 1 : i64, tpu.core_type = #tpu.core_type<tc>, window_params = [{transform_indices = @transform_0, window_bounds = array<i64: 8, 128>}, {transform_indices = @transform_1, window_bounds = array<i64: 128, 128>}, {transform_indices = @transform_2, window_bounds = array<i64: 1, 128>}, {transform_indices = @transform_3, window_bounds = array<i64: 8, 128>}]} {
    %c0_i32 = arith.constant 0 : i32
    %0 = arith.cmpi eq, %arg2, %c0_i32 : i32
    %1 = arith.extui %0 : i1 to i32
    %c0_i32_0 = arith.constant 0 : i32
    %2 = arith.cmpi ne, %1, %c0_i32_0 : i32
    scf.if %2 {
      %cst_10 = arith.constant 0.000000e+00 : f32
      %12 = vector.broadcast %cst_10 : f32 to vector<8x128xf32>
      %c0_11 = arith.constant 0 : index
      %c0_12 = arith.constant 0 : index
      %13 = vector.load %arg7[%c0_11, %c0_12] : memref<8x128xf32, #tpu.memory_space<vmem>>, vector<8x128xf32>
      tpu.vector_store %arg7[%c0_11, %c0_12], %12 {strides = array<i32>} : memref<8x128xf32, #tpu.memory_space<vmem>>, vector<8x128xf32>,
    } else {
    }
    %c0 = arith.constant 0 : index
    %c0_1 = arith.constant 0 : index
    %3 = vector.load %arg7[%c0, %c0_1] : memref<8x128xf32, #tpu.memory_space<vmem>>, vector<8x128xf32>
    %c0_2 = arith.constant 0 : index
    %c0_3 = arith.constant 0 : index
    %4 = vector.load %arg3[%c0_2, %c0_3] : memref<8x128xf32, #tpu.memory_space<vmem>>, vector<8x128xf32>
    %c0_4 = arith.constant 0 : index
    %c0_5 = arith.constant 0 : index
    %5 = vector.load %arg4[%c0_4, %c0_5] : memref<128x128xf32, #tpu.memory_space<vmem>>, vector<128x128xf32>
    %cst = arith.constant dense<0.000000e+00> : vector<8x128xf32>
    %6 = tpu.matmul %4, %5, %cst {dimension_numbers = #tpu.dot_dimension_numbers<[1], [0], [0], [1], [0, 0, 1, 1], [], []>} : vector<8x128xf32>, vector<128x128xf32>, vector<8x128xf32> -> vector<8x128xf32>
    %7 = arith.addf %3, %6 : vector<8x128xf32>
    %c0_6 = arith.constant 0 : index
    %c0_7 = arith.constant 0 : index
    %8 = vector.load %arg7[%c0_6, %c0_7] : memref<8x128xf32, #tpu.memory_space<vmem>>, vector<8x128xf32>
    tpu.vector_store %arg7[%c0_6, %c0_7], %7 {strides = array<i32>} : memref<8x128xf32, #tpu.memory_space<vmem>>, vector<8x128xf32>,
    %c0_i32_8 = arith.constant 0 : i32
    %9 = arith.cmpi eq, %arg2, %c0_i32_8 : i32
    %10 = arith.extui %9 : i1 to i32
    %c0_i32_9 = arith.constant 0 : i32
    %11 = arith.cmpi ne, %10, %c0_i32_9 : i32
    scf.if %11 {
      %c0_10 = arith.constant 0 : index
      %c0_11 = arith.constant 0 : index
      %12 = vector.load %arg7[%c0_10, %c0_11] : memref<8x128xf32, #tpu.memory_space<vmem>>, vector<8x128xf32>
      %c0_12 = arith.constant 0 : index
      %c0_13 = arith.constant 0 : index
      %13 = vector.load %arg5[%c0_12, %c0_13] : memref<1x128xf32, #tpu.memory_space<vmem>>, vector<1x128xf32>
      %14 = vector.broadcast %13 : vector<1x128xf32> to vector<8x128xf32>
      %15 = arith.addf %12, %14 : vector<8x128xf32>
      %cst_14 = arith.constant 0.000000e+00 : f32
      %16 = vector.broadcast %cst_14 : f32 to vector<8x128xf32>
      %17 = arith.maximumf %15, %16 : vector<8x128xf32>
      %c0_15 = arith.constant 0 : index
      %c0_16 = arith.constant 0 : index
      %18 = vector.load %arg6[%c0_15, %c0_16] : memref<8x128xf32, #tpu.memory_space<vmem>>, vector<8x128xf32>
      tpu.vector_store %arg6[%c0_15, %c0_16], %17 {strides = array<i32>} : memref<8x128xf32, #tpu.memory_space<vmem>>, vector<8x128xf32>,
    } else {
    }
    return
  }
  func.func @transform_0(%arg0: i32, %arg1: i32, %arg2: i32) -> (i32, i32) {
    %c0_i32 = arith.constant 0 : i32
    return %arg0, %arg2 : i32, i32
  }
  func.func @transform_1(%arg0: i32, %arg1: i32, %arg2: i32) -> (i32, i32) {
    %c0_i32 = arith.constant 0 : i32
    return %arg2, %arg1 : i32, i32
  }
  func.func @transform_2(%arg0: i32, %arg1: i32, %arg2: i32) -> (i32, i32) {
    %c0_i32 = arith.constant 0 : i32
    %c0_i32_0 = arith.constant 0 : i32
    return %c0_i32, %arg1 : i32, i32
  }
  func.func @transform_3(%arg0: i32, %arg1: i32, %arg2: i32) -> (i32, i32) {
    %c0_i32 = arith.constant 0 : i32
    return %arg0, %arg1 : i32, i32
  }
}

</mosaic_0001>

<llo_original>
// kernel: tpu_custom_call.1
$region0: #{tpu_custom_call.1}
  #allocation0 [shape = 'u32[]', space=smem, size = 0x4, offset = 0x4, fixed_abs, tag = 'smem constant byte address 0x4 - core index']
  #allocation1 [shape = 'u32[144,128]{1,0:T(1,128)}', space=vmem, size = 0x12000, scoped, tag = 'internal scratch']
  %s0 = inlined_call_operand.hbm [shape: f32[8,128], index: 0, kind: input, shape index: {}]
  %s1 = inlined_call_operand.hbm [shape: f32[128,128], index: 1, kind: input, shape index: {}]
  %s2 = inlined_call_operand.vmem [shape: f32[1,128], index: 2, kind: input, shape index: {}]
  %s3 = inlined_call_operand.hbm [shape: f32[128,128], index: 3, kind: input, shape index: {}]
  %s4 = inlined_call_operand.vmem [shape: f32[1,128], index: 4, kind: input, shape index: {}]
  %s5 = inlined_call_operand.hbm [shape: f32[128,128], index: 5, kind: input, shape index: {}]
  %s6 = inlined_call_operand.vmem [shape: f32[1,128], index: 6, kind: input, shape index: {}]
  %s7 = inlined_call_operand.hbm [shape: f32[8,128], index: 7, kind: output, shape index: {}]
  %s8 = sld [smem:[#allocation0]]
  $region54: #{tpu_custom_call.1} parent=0
    _
  %s10 = ssub.s32 1, %s8
  %s11 = scalar_select 0, %s10, %s8
  $region1: #{tpu_custom_call.1} parent=0
    #allocation2 [shape = 'u8[4096]{0}', space=vmem, size = 0x1000, scoped, tag = 'input window, operand 0, single buffered']
    #allocation3 [shape = 's32[1]{0}', space=sflag, size = 0x4, scoped, tag = 'scoped memory for tpu_custom_call.1']
    #allocation4 [shape = 's32[1]{0}', space=sflag, size = 0x4, scoped, tag = 'scoped memory for tpu_custom_call.1']
    #allocation5 [shape = 'u8[65536]{0}', space=vmem, size = 0x10000, scoped, tag = 'input window, operand 1, single buffered']
    #allocation6 [shape = 's32[1]{0}', space=sflag, size = 0x4, scoped, tag = 'scoped memory for tpu_custom_call.1']
    #allocation7 [shape = 'u8[65536]{0}', space=vmem, size = 0x10000, scoped, tag = 'input window, operand 3, single buffered']
    #allocation8 [shape = 'u8[65536]{0}', space=vmem, size = 0x10000, scoped, tag = 'input window, operand 5, single buffered']
    #allocation9 [shape = 's32[1]{0}', space=sflag, size = 0x4, scoped, tag = 'scoped memory for tpu_custom_call.1']
    #allocation10 [shape = 'u8[4096]{0}', space=vmem, size = 0x1000, scoped, tag = 'output window, operand 0, single buffered']
    %12 = vsyncpa [#allocation3], 0
    %13 = vsyncpa [#allocation6], 0
    %14 = vsyncpa [#allocation9], 0
    %15 = vsyncpa [#allocation4], 0
    // Predicated region
    $region2: #{tpu_custom_call.1} parent=1 // pred_check
      _
    $region3: #{tpu_custom_call.1} parent=1 // pred_check_branch
      %17 = sbr.rel (0) target = $region5
    $region4: #{tpu_custom_call.1} parent=1 // pred_region
      %s19 = ssub.s32 128, 128
      %20 = vsyncadd [#allocation3], %s19
      %s22 = sshll.u32 [#allocation2], 4
      %s23 = int_to_ptr.vmem [resolvable:$true] %s22
      %25 = dma.hbm_to_vmem [thread:$0]  %s0, 128, %s23, [#allocation3]
    $region5: #{tpu_custom_call.1} parent=1 // pred_fallthru
      _
    // Predicated region
    $region6: #{tpu_custom_call.1} parent=1 // pred_check
      _
    $region7: #{tpu_custom_call.1} parent=1 // pred_check_branch
      %27 = sbr.rel (0) target = $region9
    $region8: #{tpu_custom_call.1} parent=1 // pred_region
      %s29 = ssub.s32 2048, 2048
      %30 = vsyncadd [#allocation6], %s29
      %s31 = sshll.u32 [#allocation5], 4
      %s32 = int_to_ptr.vmem [resolvable:$true] %s31
      %37 = dma.hbm_to_vmem [thread:$0]  %s1, 2048, %s32, [#allocation6], 128, 128, 8
    $region9: #{tpu_custom_call.1} parent=1 // pred_fallthru
      _
    // Predicated region
    $region10: #{tpu_custom_call.1} parent=1 // pred_check
      _
    $region11: #{tpu_custom_call.1} parent=1 // pred_check_branch
      %39 = sbr.rel (0) target = $region13
    $region12: #{tpu_custom_call.1} parent=1 // pred_region
      _
    $region13: #{tpu_custom_call.1} parent=1 // pred_fallthru
      _
    // Predicated region
    $region14: #{tpu_custom_call.1} parent=1 // pred_check
      _
    $region15: #{tpu_custom_call.1} parent=1 // pred_check_branch
      %41 = sbr.rel (0) target = $region17
    $region16: #{tpu_custom_call.1} parent=1 // pred_region
      %s43 = ssub.s32 2048, 2048
      %44 = vsyncadd [#allocation6], %s43
      %s45 = sshll.u32 [#allocation7], 4
      %s46 = int_to_ptr.vmem [resolvable:$true] %s45
      %51 = dma.hbm_to_vmem [thread:$0]  %s3, 2048, %s46, [#allocation6], 128, 128, 8
    $region17: #{tpu_custom_call.1} parent=1 // pred_fallthru
      _
    // Predicated region
    $region18: #{tpu_custom_call.1} parent=1 // pred_check
      _
    $region19: #{tpu_custom_call.1} parent=1 // pred_check_branch
      %53 = sbr.rel (0) target = $region21
    $region20: #{tpu_custom_call.1} parent=1 // pred_region
      _
    $region21: #{tpu_custom_call.1} parent=1 // pred_fallthru
      _
    // Predicated region
    $region22: #{tpu_custom_call.1} parent=1 // pred_check
      _
    $region23: #{tpu_custom_call.1} parent=1 // pred_check_branch
      %55 = sbr.rel (0) target = $region25
    $region24: #{tpu_custom_call.1} parent=1 // pred_region
      %s57 = ssub.s32 2048, 2048
      %58 = vsyncadd [#allocation9], %s57
      %s59 = sshll.u32 [#allocation8], 4
      %s60 = int_to_ptr.vmem [resolvable:$true] %s59
      %65 = dma.hbm_to_vmem [thread:$0]  %s5, 2048, %s60, [#allocation9], 128, 128, 8
    $region25: #{tpu_custom_call.1} parent=1 // pred_fallthru
      _
    // Predicated region
    $region26: #{tpu_custom_call.1} parent=1 // pred_check
      _
    $region27: #{tpu_custom_call.1} parent=1 // pred_check_branch
      %67 = sbr.rel (0) target = $region29
    $region28: #{tpu_custom_call.1} parent=1 // pred_region
      _
    $region29: #{tpu_custom_call.1} parent=1 // pred_fallthru
      _
    // Predicated region
    $region30: #{tpu_custom_call.1} parent=1 // pred_check
      _
    $region31: #{tpu_custom_call.1} parent=1 // pred_check_branch
      %69 = sbr.rel (0) target = $region33
    $region32: #{tpu_custom_call.1} parent=1 // pred_region
      %70 = dma.done [#allocation3], 128
    $region33: #{tpu_custom_call.1} parent=1 // pred_fallthru
      _
    // Predicated region
    $region34: #{tpu_custom_call.1} parent=1 // pred_check
      _
    $region35: #{tpu_custom_call.1} parent=1 // pred_check_branch
      %72 = sbr.rel (0) target = $region37
    $region36: #{tpu_custom_call.1} parent=1 // pred_region
      %73 = dma.done [#allocation6], 2048
    $region37: #{tpu_custom_call.1} parent=1 // pred_fallthru
      _
    // Predicated region
    $region38: #{tpu_custom_call.1} parent=1 // pred_check
      _
    $region39: #{tpu_custom_call.1} parent=1 // pred_check_branch
      %75 = sbr.rel (0) target = $region41
    $region40: #{tpu_custom_call.1} parent=1 // pred_region
      %76 = dma.done [#allocation6], 2048
    $region41: #{tpu_custom_call.1} parent=1 // pred_fallthru
      _
    // Predicated region
    $region42: #{tpu_custom_call.1} parent=1 // pred_check
      _
    $region43: #{tpu_custom_call.1} parent=1 // pred_check_branch
      %78 = sbr.rel (0) target = $region45
    $region44: #{tpu_custom_call.1} parent=1 // pred_region
      %79 = dma.done [#allocation9], 2048
    $region45: #{tpu_custom_call.1} parent=1 // pred_fallthru
      _
    %v80 = vld [vmem:[#allocation2] sm:$0xff]
    %v81 = vld [vmem:[#allocation5] sm:$0xff]
    %v82 = vld [vmem:[#allocation5 + $0x8] sm:$0xff]
    %v83 = vld [vmem:[#allocation5 + $0x10] sm:$0xff]
    %v84 = vld [vmem:[#allocation5 + $0x18] sm:$0xff]
    %v85 = vld [vmem:[#allocation5 + $0x20] sm:$0xff]
    %v86 = vld [vmem:[#allocation5 + $0x28] sm:$0xff]
    %v87 = vld [vmem:[#allocation5 + $0x30] sm:$0xff]
    %v88 = vld [vmem:[#allocation5 + $0x38] sm:$0xff]
    %v89 = vld [vmem:[#allocation5 + $0x40] sm:$0xff]
    %v90 = vld [vmem:[#allocation5 + $0x48] sm:$0xff]
    %v91 = vld [vmem:[#allocation5 + $0x50] sm:$0xff]
    %v92 = vld [vmem:[#allocation5 + $0x58] sm:$0xff]
    %v93 = vld [vmem:[#allocation5 + $0x60] sm:$0xff]
    %v94 = vld [vmem:[#allocation5 + $0x68] sm:$0xff]
    %v95 = vld [vmem:[#allocation5 + $0x70] sm:$0xff]
    %v96 = vld [vmem:[#allocation5 + $0x78] sm:$0xff]
    %v97 = vld [vmem:[%s2] sm:$0x1]
    %v99 = vlaneseq
    %v100 = vshrl.u32 %v99, 7
    %v101 = vsub.s32 0, %v100
    %v102 = vrot.slane %v97, %v101
    %104 = vmatprep.subr.mxu0 0.0
    %105 = vmatpush1.msra.mxu0 %v81
    %106 = vmatprep.subr.mxu0 0.0
    %107 = vmatpush1.msra.mxu0 %v82
    %108 = vmatprep.subr.mxu0 0.0
    %109 = vmatpush1.msra.mxu0 %v83
    %110 = vmatprep.subr.mxu0 0.0
    %111 = vmatpush1.msra.mxu0 %v84
    %112 = vmatprep.subr.mxu0 0.0
    %113 = vmatpush1.msra.mxu0 %v85
    %114 = vmatprep.subr.mxu0 0.0
    %115 = vmatpush1.msra.mxu0 %v86
    %116 = vmatprep.subr.mxu0 0.0
    %117 = vmatpush1.msra.mxu0 %v87
    %118 = vmatprep.subr.mxu0 0.0
    %119 = vmatpush1.msra.mxu0 %v88
    %120 = vmatprep.subr.mxu0 0.0
    %121 = vmatpush1.msra.mxu0 %v89
    %122 = vmatprep.subr.mxu0 0.0
    %123 = vmatpush1.msra.mxu0 %v90
    %124 = vmatprep.subr.mxu0 0.0
    %125 = vmatpush1.msra.mxu0 %v91
    %126 = vmatprep.subr.mxu0 0.0
    %127 = vmatpush1.msra.mxu0 %v92
    %128 = vmatprep.subr.mxu0 0.0
    %129 = vmatpush1.msra.mxu0 %v93
    %130 = vmatprep.subr.mxu0 0.0
    %131 = vmatpush1.msra.mxu0 %v94
    %132 = vmatprep.subr.mxu0 0.0
    %133 = vmatpush1.msra.mxu0 %v95
    %134 = vmatprep.subr.mxu0 0.0
    %135 = vmatpush1.msra.mxu0 %v96
    %136 = vmatprep.subr.mxu0 0.0
    %137 = vmatpush1.msra.mxu0 0.0
    %138 = vmatprep.subr.mxu0 0.0
    %139 = vmatpush1.msra.mxu0 0.0
    %140 = vmatprep.subr.mxu0 0.0
    %141 = vmatpush1.msra.mxu0 0.0
    %142 = vmatprep.subr.mxu0 0.0
    %143 = vmatpush1.msra.mxu0 0.0
    %144 = vmatprep.subr.mxu0 0.0
    %145 = vmatpush1.msra.mxu0 0.0
    %146 = vmatprep.subr.mxu0 0.0
    %147 = vmatpush1.msra.mxu0 0.0
    %148 = vmatprep.subr.mxu0 0.0
    %149 = vmatpush1.msra.mxu0 0.0
    %150 = vmatprep.subr.mxu0 0.0
    %151 = vmatpush1.msra.mxu0 0.0
    %152 = vmatprep.subr.mxu0 0.0
    %153 = vmatpush1.msra.mxu0 0.0
    %154 = vmatprep.subr.mxu0 0.0
    %155 = vmatpush1.msra.mxu0 0.0
    %156 = vmatprep.subr.mxu0 0.0
    %157 = vmatpush1.msra.mxu0 0.0
    %158 = vmatprep.subr.mxu0 0.0
    %159 = vmatpush1.msra.mxu0 0.0
    %160 = vmatprep.subr.mxu0 0.0
    %161 = vmatpush1.msra.mxu0 0.0
    %162 = vmatprep.subr.mxu0 0.0
    %163 = vmatpush1.msra.mxu0 0.0
    %164 = vmatprep.subr.mxu0 0.0
    %165 = vmatpush1.msra.mxu0 0.0
    %166 = vmatprep.subr.mxu0 0.0
    %167 = vmatpush1.msra.mxu0 0.0
    %168 = vmatprep.mubr.f32.mxu0 0.0
    %169 = vmatmul.mubr.f32.gmra.mrb[0].mxu0 %v80
    %v170 = vpop.f32.mrb[0].mxu0
    %v171 = vadd.f32 %v102, %v170
    %v172 = vpop.f32.mrb[0].mxu0
    %173 = vdwg.mxu0
    %v174 = vmax.f32 %v171, 0.0
    %v175 = vld [vmem:[#allocation7] sm:$0xff]
    %v176 = vld [vmem:[#allocation7 + $0x8] sm:$0xff]
    %v177 = vld [vmem:[#allocation7 + $0x10] sm:$0xff]
    %v178 = vld [vmem:[#allocation7 + $0x18] sm:$0xff]
    %v179 = vld [vmem:[#allocation7 + $0x20] sm:$0xff]
    %v180 = vld [vmem:[#allocation7 + $0x28] sm:$0xff]
    %v181 = vld [vmem:[#allocation7 + $0x30] sm:$0xff]
    %v182 = vld [vmem:[#allocation7 + $0x38] sm:$0xff]
    %v183 = vld [vmem:[#allocation7 + $0x40] sm:$0xff]
    %v184 = vld [vmem:[#allocation7 + $0x48] sm:$0xff]
    %v185 = vld [vmem:[#allocation7 + $0x50] sm:$0xff]
    %v186 = vld [vmem:[#allocation7 + $0x58] sm:$0xff]
    %v187 = vld [vmem:[#allocation7 + $0x60] sm:$0xff]
    %v188 = vld [vmem:[#allocation7 + $0x68] sm:$0xff]
    %v189 = vld [vmem:[#allocation7 + $0x70] sm:$0xff]
    %v190 = vld [vmem:[#allocation7 + $0x78] sm:$0xff]
    %v191 = vld [vmem:[%s4] sm:$0x1]
    %v193 = vlaneseq
    %v194 = vshrl.u32 %v193, 7
    %v195 = vsub.s32 0, %v194
    %v196 = vrot.slane %v191, %v195
    %198 = vmatprep.subr.mxu0 0.0
    %199 = vmatpush1.msra.mxu0 %v175
    %200 = vmatprep.subr.mxu0 0.0
    %201 = vmatpush1.msra.mxu0 %v176
    %202 = vmatprep.subr.mxu0 0.0
    %203 = vmatpush1.msra.mxu0 %v177
    %204 = vmatprep.subr.mxu0 0.0
    %205 = vmatpush1.msra.mxu0 %v178
    %206 = vmatprep.subr.mxu0 0.0
    %207 = vmatpush1.msra.mxu0 %v179
    %208 = vmatprep.subr.mxu0 0.0
    %209 = vmatpush1.msra.mxu0 %v180
    %210 = vmatprep.subr.mxu0 0.0
    %211 = vmatpush1.msra.mxu0 %v181
    %212 = vmatprep.subr.mxu0 0.0
    %213 = vmatpush1.msra.mxu0 %v182
    %214 = vmatprep.subr.mxu0 0.0
    %215 = vmatpush1.msra.mxu0 %v183
    %216 = vmatprep.subr.mxu0 0.0
    %217 = vmatpush1.msra.mxu0 %v184
    %218 = vmatprep.subr.mxu0 0.0
    %219 = vmatpush1.msra.mxu0 %v185
    %220 = vmatprep.subr.mxu0 0.0
    %221 = vmatpush1.msra.mxu0 %v186
    %222 = vmatprep.subr.mxu0 0.0
    %223 = vmatpush1.msra.mxu0 %v187
    %224 = vmatprep.subr.mxu0 0.0
    %225 = vmatpush1.msra.mxu0 %v188
    %226 = vmatprep.subr.mxu0 0.0
    %227 = vmatpush1.msra.mxu0 %v189
    %228 = vmatprep.subr.mxu0 0.0
    %229 = vmatpush1.msra.mxu0 %v190
    %230 = vmatprep.subr.mxu0 0.0
    %231 = vmatpush1.msra.mxu0 0.0
    %232 = vmatprep.subr.mxu0 0.0
    %233 = vmatpush1.msra.mxu0 0.0
    %234 = vmatprep.subr.mxu0 0.0
    %235 = vmatpush1.msra.mxu0 0.0
    %236 = vmatprep.subr.mxu0 0.0
    %237 = vmatpush1.msra.mxu0 0.0
    %238 = vmatprep.subr.mxu0 0.0
    %239 = vmatpush1.msra.mxu0 0.0
    %240 = vmatprep.subr.mxu0 0.0
    %241 = vmatpush1.msra.mxu0 0.0
    %242 = vmatprep.subr.mxu0 0.0
    %243 = vmatpush1.msra.mxu0 0.0
    %244 = vmatprep.subr.mxu0 0.0
    %245 = vmatpush1.msra.mxu0 0.0
    %246 = vmatprep.subr.mxu0 0.0
    %247 = vmatpush1.msra.mxu0 0.0
    %248 = vmatprep.subr.mxu0 0.0
    %249 = vmatpush1.msra.mxu0 0.0
    %250 = vmatprep.subr.mxu0 0.0
    %251 = vmatpush1.msra.mxu0 0.0
    %252 = vmatprep.subr.mxu0 0.0
    %253 = vmatpush1.msra.mxu0 0.0
    %254 = vmatprep.subr.mxu0 0.0
    %255 = vmatpush1.msra.mxu0 0.0
    %256 = vmatprep.subr.mxu0 0.0
    %257 = vmatpush1.msra.mxu0 0.0
    %258 = vmatprep.subr.mxu0 0.0
    %259 = vmatpush1.msra.mxu0 0.0
    %260 = vmatprep.subr.mxu0 0.0
    %261 = vmatpush1.msra.mxu0 0.0
    %262 = vmatprep.mubr.f32.mxu0 0.0
    %263 = vmatmul.mubr.f32.gmra.mrb[0].mxu0 %v174
    %v264 = vpop.f32.mrb[0].mxu0
    %v265 = vadd.f32 %v196, %v264
    %v266 = vpop.f32.mrb[0].mxu0
    %267 = vdwg.mxu0
    %v268 = vmax.f32 %v265, 0.0
    %v269 = vld [vmem:[#allocation8] sm:$0xff]
    %v270 = vld [vmem:[#allocation8 + $0x8] sm:$0xff]
    %v271 = vld [vmem:[#allocation8 + $0x10] sm:$0xff]
    %v272 = vld [vmem:[#allocation8 + $0x18] sm:$0xff]
    %v273 = vld [vmem:[#allocation8 + $0x20] sm:$0xff]
    %v274 = vld [vmem:[#allocation8 + $0x28] sm:$0xff]
    %v275 = vld [vmem:[#allocation8 + $0x30] sm:$0xff]
    %v276 = vld [vmem:[#allocation8 + $0x38] sm:$0xff]
    %v277 = vld [vmem:[#allocation8 + $0x40] sm:$0xff]
    %v278 = vld [vmem:[#allocation8 + $0x48] sm:$0xff]
    %v279 = vld [vmem:[#allocation8 + $0x50] sm:$0xff]
    %v280 = vld [vmem:[#allocation8 + $0x58] sm:$0xff]
    %v281 = vld [vmem:[#allocation8 + $0x60] sm:$0xff]
    %v282 = vld [vmem:[#allocation8 + $0x68] sm:$0xff]
    %v283 = vld [vmem:[#allocation8 + $0x70] sm:$0xff]
    %v284 = vld [vmem:[#allocation8 + $0x78] sm:$0xff]
    %v285 = vld [vmem:[%s6] sm:$0x1]
    %v287 = vlaneseq
    %v288 = vshrl.u32 %v287, 7
    %v289 = vsub.s32 0, %v288
    %v290 = vrot.slane %v285, %v289
    %292 = vmatprep.subr.mxu0 0.0
    %293 = vmatpush1.msra.mxu0 %v269
    %294 = vmatprep.subr.mxu0 0.0
    %295 = vmatpush1.msra.mxu0 %v270
    %296 = vmatprep.subr.mxu0 0.0
    %297 = vmatpush1.msra.mxu0 %v271
    %298 = vmatprep.subr.mxu0 0.0
    %299 = vmatpush1.msra.mxu0 %v272
    %300 = vmatprep.subr.mxu0 0.0
    %301 = vmatpush1.msra.mxu0 %v273
    %302 = vmatprep.subr.mxu0 0.0
    %303 = vmatpush1.msra.mxu0 %v274
    %304 = vmatprep.subr.mxu0 0.0
    %305 = vmatpush1.msra.mxu0 %v275
    %306 = vmatprep.subr.mxu0 0.0
    %307 = vmatpush1.msra.mxu0 %v276
    %308 = vmatprep.subr.mxu0 0.0
    %309 = vmatpush1.msra.mxu0 %v277
    %310 = vmatprep.subr.mxu0 0.0
    %311 = vmatpush1.msra.mxu0 %v278
    %312 = vmatprep.subr.mxu0 0.0
    %313 = vmatpush1.msra.mxu0 %v279
    %314 = vmatprep.subr.mxu0 0.0
    %315 = vmatpush1.msra.mxu0 %v280
    %316 = vmatprep.subr.mxu0 0.0
    %317 = vmatpush1.msra.mxu0 %v281
    %318 = vmatprep.subr.mxu0 0.0
    %319 = vmatpush1.msra.mxu0 %v282
    %320 = vmatprep.subr.mxu0 0.0
    %321 = vmatpush1.msra.mxu0 %v283
    %322 = vmatprep.subr.mxu0 0.0
    %323 = vmatpush1.msra.mxu0 %v284
    %324 = vmatprep.subr.mxu0 0.0
    %325 = vmatpush1.msra.mxu0 0.0
    %326 = vmatprep.subr.mxu0 0.0
    %327 = vmatpush1.msra.mxu0 0.0
    %328 = vmatprep.subr.mxu0 0.0
    %329 = vmatpush1.msra.mxu0 0.0
    %330 = vmatprep.subr.mxu0 0.0
    %331 = vmatpush1.msra.mxu0 0.0
    %332 = vmatprep.subr.mxu0 0.0
    %333 = vmatpush1.msra.mxu0 0.0
    %334 = vmatprep.subr.mxu0 0.0
    %335 = vmatpush1.msra.mxu0 0.0
    %336 = vmatprep.subr.mxu0 0.0
    %337 = vmatpush1.msra.mxu0 0.0
    %338 = vmatprep.subr.mxu0 0.0
    %339 = vmatpush1.msra.mxu0 0.0
    %340 = vmatprep.subr.mxu0 0.0
    %341 = vmatpush1.msra.mxu0 0.0
    %342 = vmatprep.subr.mxu0 0.0
    %343 = vmatpush1.msra.mxu0 0.0
    %344 = vmatprep.subr.mxu0 0.0
    %345 = vmatpush1.msra.mxu0 0.0
    %346 = vmatprep.subr.mxu0 0.0
    %347 = vmatpush1.msra.mxu0 0.0
    %348 = vmatprep.subr.mxu0 0.0
    %349 = vmatpush1.msra.mxu0 0.0
    %350 = vmatprep.subr.mxu0 0.0
    %351 = vmatpush1.msra.mxu0 0.0
    %352 = vmatprep.subr.mxu0 0.0
    %353 = vmatpush1.msra.mxu0 0.0
    %354 = vmatprep.subr.mxu0 0.0
    %355 = vmatpush1.msra.mxu0 0.0
    %356 = vmatprep.mubr.f32.mxu0 0.0
    %357 = vmatmul.mubr.f32.gmra.mrb[0].mxu0 %v268
    %v358 = vpop.f32.mrb[0].mxu0
    %v359 = vadd.f32 %v290, %v358
    %v360 = vpop.f32.mrb[0].mxu0
    %361 = vdwg.mxu0
    %362 = vst [vmem:[#allocation10] sm:$0xff] %v359
    // Predicated region
    $region46: #{tpu_custom_call.1} parent=1 // pred_check
      _
    $region47: #{tpu_custom_call.1} parent=1 // pred_check_branch
      %364 = sbr.rel (0) target = $region49
    $region48: #{tpu_custom_call.1} parent=1 // pred_region
      %s366 = ssub.s32 128, 128
      %367 = vsyncadd [#allocation4], %s366
      %s369 = sshll.u32 [#allocation10], 4
      %s370 = int_to_ptr.vmem [resolvable:$true] %s369
      %372 = dma.vmem_to_hbm [thread:$0]  %s370, 128, %s7, [#allocation4]
    $region49: #{tpu_custom_call.1} parent=1 // pred_fallthru
      _
    // Predicated region
    $region50: #{tpu_custom_call.1} parent=1 // pred_check
      _
    $region51: #{tpu_custom_call.1} parent=1 // pred_check_branch
      %374 = sbr.rel (0) target = $region53
    $region52: #{tpu_custom_call.1} parent=1 // pred_region
      %375 = dma.done [#allocation4], 128
    $region53: #{tpu_custom_call.1} parent=1 // pred_fallthru
      _
    %376 = vsyncpa [#allocation3], 1
    %377 = vsyncpa [#allocation6], 1
    %378 = vsyncpa [#allocation9], 1
    %379 = vsyncpa [#allocation4], 1

// kernel: tpu_custom_call.1
$region0: #{tpu_custom_call.1}
  #allocation0 [shape = 'u32[]', space=smem, size = 0x4, offset = 0x4, fixed_abs, tag = 'smem constant byte address 0x4 - core index']
  #allocation1 [shape = 'u32[144,128]{1,0:T(1,128)}', space=vmem, size = 0x12000, scoped, tag = 'internal scratch']
  %s0 = inlined_call_operand.hbm [shape: f32[8,128], index: 0, kind: input, shape index: {}]
  %s1 = inlined_call_operand.hbm [shape: f32[128,128], index: 1, kind: input, shape index: {}]
  %s2 = inlined_call_operand.vmem [shape: f32[1,128], index: 2, kind: input, shape index: {}]
  %s3 = inlined_call_operand.hbm [shape: f32[128,128], index: 3, kind: input, shape index: {}]
  %s4 = inlined_call_operand.vmem [shape: f32[1,128], index: 4, kind: input, shape index: {}]
  %s5 = inlined_call_operand.hbm [shape: f32[128,128], index: 5, kind: input, shape index: {}]
  %s6 = inlined_call_operand.vmem [shape: f32[1,128], index: 6, kind: input, shape index: {}]
  %s7 = inlined_call_operand.hbm [shape: f32[8,128], index: 7, kind: output, shape index: {}]
  %s8 = sld [smem:[#allocation0]]
  $region54: #{tpu_custom_call.1} parent=0
    _
  %s10 = ssub.s32 1, %s8
  %s11 = scalar_select 0, %s10, %s8
  $region1: #{tpu_custom_call.1} parent=0
    #allocation2 [shape = 'u8[4096]{0}', space=vmem, size = 0x1000, scoped, tag = 'input window, operand 0, single buffered']
    #allocation3 [shape = 's32[1]{0}', space=sflag, size = 0x4, scoped, tag = 'scoped memory for tpu_custom_call.1']
    #allocation4 [shape = 's32[1]{0}', space=sflag, size = 0x4, scoped, tag = 'scoped memory for tpu_custom_call.1']
    #allocation5 [shape = 'u8[65536]{0}', space=vmem, size = 0x10000, scoped, tag = 'input window, operand 1, single buffered']
    #allocation6 [shape = 's32[1]{0}', space=sflag, size = 0x4, scoped, tag = 'scoped memory for tpu_custom_call.1']
    #allocation7 [shape = 'u8[65536]{0}', space=vmem, size = 0x10000, scoped, tag = 'input window, operand 3, single buffered']
    #allocation8 [shape = 'u8[65536]{0}', space=vmem, size = 0x10000, scoped, tag = 'input window, operand 5, single buffered']
    #allocation9 [shape = 's32[1]{0}', space=sflag, size = 0x4, scoped, tag = 'scoped memory for tpu_custom_call.1']
    #allocation10 [shape = 'u8[4096]{0}', space=vmem, size = 0x1000, scoped, tag = 'output window, operand 0, single buffered']
    %12 = vsyncpa [#allocation3], 0
    %13 = vsyncpa [#allocation6], 0
    %14 = vsyncpa [#allocation9], 0
    %15 = vsyncpa [#allocation4], 0
    // Predicated region
    $region2: #{tpu_custom_call.1} parent=1 // pred_check
      _
    $region3: #{tpu_custom_call.1} parent=1 // pred_check_branch
      %17 = sbr.rel (0) target = $region5
    $region4: #{tpu_custom_call.1} parent=1 // pred_region
      %s19 = ssub.s32 128, 128
      %20 = vsyncadd [#allocation3], %s19
      %s22 = sshll.u32 [#allocation2], 4
      %s23 = int_to_ptr.vmem [resolvable:$true] %s22
      %25 = dma.hbm_to_vmem [thread:$0]  %s0, 128, %s23, [#allocation3]
    $region5: #{tpu_custom_call.1} parent=1 // pred_fallthru
      _
    // Predicated region
    $region6: #{tpu_custom_call.1} parent=1 // pred_check
      _
    $region7: #{tpu_custom_call.1} parent=1 // pred_check_branch
      %27 = sbr.rel (0) target = $region9
    $region8: #{tpu_custom_call.1} parent=1 // pred_region
      %s29 = ssub.s32 2048, 2048
      %30 = vsyncadd [#allocation6], %s29
      %s31 = sshll.u32 [#allocation5], 4
      %s32 = int_to_ptr.vmem [resolvable:$true] %s31
      %37 = dma.hbm_to_vmem [thread:$0]  %s1, 2048, %s32, [#allocation6], 128, 128, 8
    $region9: #{tpu_custom_call.1} parent=1 // pred_fallthru
      _
    // Predicated region
    $region10: #{tpu_custom_call.1} parent=1 // pred_check
      _
    $region11: #{tpu_custom_call.1} parent=1 // pred_check_branch
      %39 = sbr.rel (0) target = $region13
    $region12: #{tpu_custom_call.1} parent=1 // pred_region
      _
    $region13: #{tpu_custom_call.1} parent=1 // pred_fallthru
      _
    // Predicated region
    $region14: #{tpu_custom_call.1} parent=1 // pred_check
      _
    $region15: #{tpu_custom_call.1} parent=1 // pred_check_branch
      %41 = sbr.rel (0) target = $region17
    $region16: #{tpu_custom_call.1} parent=1 // pred_region
      %s43 = ssub.s32 2048, 2048
      %44 = vsyncadd [#allocation6], %s43
      %s45 = sshll.u32 [#allocation7], 4
      %s46 = int_to_ptr.vmem [resolvable:$true] %s45
      %51 = dma.hbm_to_vmem [thread:$0]  %s3, 2048, %s46, [#allocation6], 128, 128, 8
    $region17: #{tpu_custom_call.1} parent=1 // pred_fallthru
      _
    // Predicated region
    $region18: #{tpu_custom_call.1} parent=1 // pred_check
      _
    $region19: #{tpu_custom_call.1} parent=1 // pred_check_branch
      %53 = sbr.rel (0) target = $region21
    $region20: #{tpu_custom_call.1} parent=1 // pred_region
      _
    $region21: #{tpu_custom_call.1} parent=1 // pred_fallthru
      _
    // Predicated region
    $region22: #{tpu_custom_call.1} parent=1 // pred_check
      _
    $region23: #{tpu_custom_call.1} parent=1 // pred_check_branch
      %55 = sbr.rel (0) target = $region25
    $region24: #{tpu_custom_call.1} parent=1 // pred_region
      %s57 = ssub.s32 2048, 2048
      %58 = vsyncadd [#allocation9], %s57
      %s59 = sshll.u32 [#allocation8], 4
      %s60 = int_to_ptr.vmem [resolvable:$true] %s59
      %65 = dma.hbm_to_vmem [thread:$0]  %s5, 2048, %s60, [#allocation9], 128, 128, 8
    $region25: #{tpu_custom_call.1} parent=1 // pred_fallthru
      _
    // Predicated region
    $region26: #{tpu_custom_call.1} parent=1 // pred_check
      _
    $region27: #{tpu_custom_call.1} parent=1 // pred_check_branch
      %67 = sbr.rel (0) target = $region29
    $region28: #{tpu_custom_call.1} parent=1 // pred_region
      _
    $region29: #{tpu_custom_call.1} parent=1 // pred_fallthru
      _
    // Predicated region
    $region30: #{tpu_custom_call.1} parent=1 // pred_check
      _
    $region31: #{tpu_custom_call.1} parent=1 // pred_check_branch
      %69 = sbr.rel (0) target = $region33
    $region32: #{tpu_custom_call.1} parent=1 // pred_region
      %70 = dma.done [#allocation3], 128
    $region33: #{tpu_custom_call.1} parent=1 // pred_fallthru
      _
    // Predicated region
    $region34: #{tpu_custom_call.1} parent=1 // pred_check
      _
    $region35: #{tpu_custom_call.1} parent=1 // pred_check_branch
      %72 = sbr.rel (0) target = $region37
    $region36: #{tpu_custom_call.1} parent=1 // pred_region
      %73 = dma.done [#allocation6], 2048
    $region37: #{tpu_custom_call.1} parent=1 // pred_fallthru
      _
    // Predicated region
    $region38: #{tpu_custom_call.1} parent=1 // pred_check
      _
    $region39: #{tpu_custom_call.1} parent=1 // pred_check_branch
      %75 = sbr.rel (0) target = $region41
    $region40: #{tpu_custom_call.1} parent=1 // pred_region
      %76 = dma.done [#allocation6], 2048
    $region41: #{tpu_custom_call.1} parent=1 // pred_fallthru
      _
    // Predicated region
    $region42: #{tpu_custom_call.1} parent=1 // pred_check
      _
    $region43: #{tpu_custom_call.1} parent=1 // pred_check_branch
      %78 = sbr.rel (0) target = $region45
    $region44: #{tpu_custom_call.1} parent=1 // pred_region
      %79 = dma.done [#allocation9], 2048
    $region45: #{tpu_custom_call.1} parent=1 // pred_fallthru
      _
    %v80 = vld [vmem:[#allocation2] sm:$0xff]
    %v81 = vld [vmem:[#allocation5] sm:$0xff]
    %v82 = vld [vmem:[#allocation5 + $0x8] sm:$0xff]
    %v83 = vld [vmem:[#allocation5 + $0x10] sm:$0xff]
    %v84 = vld [vmem:[#allocation5 + $0x18] sm:$0xff]
    %v85 = vld [vmem:[#allocation5 + $0x20] sm:$0xff]
    %v86 = vld [vmem:[#allocation5 + $0x28] sm:$0xff]
    %v87 = vld [vmem:[#allocation5 + $0x30] sm:$0xff]
    %v88 = vld [vmem:[#allocation5 + $0x38] sm:$0xff]
    %v89 = vld [vmem:[#allocation5 + $0x40] sm:$0xff]
    %v90 = vld [vmem:[#allocation5 + $0x48] sm:$0xff]
    %v91 = vld [vmem:[#allocation5 + $0x50] sm:$0xff]
    %v92 = vld [vmem:[#allocation5 + $0x58] sm:$0xff]
    %v93 = vld [vmem:[#allocation5 + $0x60] sm:$0xff]
    %v94 = vld [vmem:[#allocation5 + $0x68] sm:$0xff]
    %v95 = vld [vmem:[#allocation5 + $0x70] sm:$0xff]
    %v96 = vld [vmem:[#allocation5 + $0x78] sm:$0xff]
    %v97 = vld [vmem:[%s2] sm:$0x1]
    %v99 = vlaneseq
    %v100 = vshrl.u32 %v99, 7
    %v101 = vsub.s32 0, %v100
    %v102 = vrot.slane %v97, %v101
    %104 = vmatprep.subr.mxu0 0.0
    %105 = vmatpush1.msra.mxu0 %v81
    %106 = vmatprep.subr.mxu0 0.0
    %107 = vmatpush1.msra.mxu0 %v82
    %108 = vmatprep.subr.mxu0 0.0
    %109 = vmatpush1.msra.mxu0 %v83
    %110 = vmatprep.subr.mxu0 0.0
    %111 = vmatpush1.msra.mxu0 %v84
    %112 = vmatprep.subr.mxu0 0.0
    %113 = vmatpush1.msra.mxu0 %v85
    %114 = vmatprep.subr.mxu0 0.0
    %115 = vmatpush1.msra.mxu0 %v86
    %116 = vmatprep.subr.mxu0 0.0
    %117 = vmatpush1.msra.mxu0 %v87
    %118 = vmatprep.subr.mxu0 0.0
    %119 = vmatpush1.msra.mxu0 %v88
    %120 = vmatprep.subr.mxu0 0.0
    %121 = vmatpush1.msra.mxu0 %v89
    %122 = vmatprep.subr.mxu0 0.0
    %123 = vmatpush1.msra.mxu0 %v90
    %124 = vmatprep.subr.mxu0 0.0
    %125 = vmatpush1.msra.mxu0 %v91
    %126 = vmatprep.subr.mxu0 0.0
    %127 = vmatpush1.msra.mxu0 %v92
    %128 = vmatprep.subr.mxu0 0.0
    %129 = vmatpush1.msra.mxu0 %v93
    %130 = vmatprep.subr.mxu0 0.0
    %131 = vmatpush1.msra.mxu0 %v94
    %132 = vmatprep.subr.mxu0 0.0
    %133 = vmatpush1.msra.mxu0 %v95
    %134 = vmatprep.subr.mxu0 0.0
    %135 = vmatpush1.msra.mxu0 %v96
    %136 = vmatprep.subr.mxu0 0.0
    %137 = vmatpush1.msra.mxu0 0.0
    %138 = vmatprep.subr.mxu0 0.0
    %139 = vmatpush1.msra.mxu0 0.0
    %140 = vmatprep.subr.mxu0 0.0
    %141 = vmatpush1.msra.mxu0 0.0
    %142 = vmatprep.subr.mxu0 0.0
    %143 = vmatpush1.msra.mxu0 0.0
    %144 = vmatprep.subr.mxu0 0.0
    %145 = vmatpush1.msra.mxu0 0.0
    %146 = vmatprep.subr.mxu0 0.0
    %147 = vmatpush1.msra.mxu0 0.0
    %148 = vmatprep.subr.mxu0 0.0
    %149 = vmatpush1.msra.mxu0 0.0
    %150 = vmatprep.subr.mxu0 0.0
    %151 = vmatpush1.msra.mxu0 0.0
    %152 = vmatprep.subr.mxu0 0.0
    %153 = vmatpush1.msra.mxu0 0.0
    %154 = vmatprep.subr.mxu0 0.0
    %155 = vmatpush1.msra.mxu0 0.0
    %156 = vmatprep.subr.mxu0 0.0
    %157 = vmatpush1.msra.mxu0 0.0
    %158 = vmatprep.subr.mxu0 0.0
    %159 = vmatpush1.msra.mxu0 0.0
    %160 = vmatprep.subr.mxu0 0.0
    %161 = vmatpush1.msra.mxu0 0.0
    %162 = vmatprep.subr.mxu0 0.0
    %163 = vmatpush1.msra.mxu0 0.0
    %164 = vmatprep.subr.mxu0 0.0
    %165 = vmatpush1.msra.mxu0 0.0
    %166 = vmatprep.subr.mxu0 0.0
    %167 = vmatpush1.msra.mxu0 0.0
    %168 = vmatprep.mubr.f32.mxu0 0.0
    %169 = vmatmul.mubr.f32.gmra.mrb[0].mxu0 %v80
    %v170 = vpop.f32.mrb[0].mxu0
    %v171 = vadd.f32 %v102, %v170
    %v172 = vpop.f32.mrb[0].mxu0
    %173 = vdwg.mxu0
    %v174 = vmax.f32 %v171, 0.0
    %v175 = vld [vmem:[#allocation7] sm:$0xff]
    %v176 = vld [vmem:[#allocation7 + $0x8] sm:$0xff]
    %v177 = vld [vmem:[#allocation7 + $0x10] sm:$0xff]
    %v178 = vld [vmem:[#allocation7 + $0x18] sm:$0xff]
    %v179 = vld [vmem:[#allocation7 + $0x20] sm:$0xff]
    %v180 = vld [vmem:[#allocation7 + $0x28] sm:$0xff]
    %v181 = vld [vmem:[#allocation7 + $0x30] sm:$0xff]
    %v182 = vld [vmem:[#allocation7 + $0x38] sm:$0xff]
    %v183 = vld [vmem:[#allocation7 + $0x40] sm:$0xff]
    %v184 = vld [vmem:[#allocation7 + $0x48] sm:$0xff]
    %v185 = vld [vmem:[#allocation7 + $0x50] sm:$0xff]
    %v186 = vld [vmem:[#allocation7 + $0x58] sm:$0xff]
    %v187 = vld [vmem:[#allocation7 + $0x60] sm:$0xff]
    %v188 = vld [vmem:[#allocation7 + $0x68] sm:$0xff]
    %v189 = vld [vmem:[#allocation7 + $0x70] sm:$0xff]
    %v190 = vld [vmem:[#allocation7 + $0x78] sm:$0xff]
    %v191 = vld [vmem:[%s4] sm:$0x1]
    %v193 = vlaneseq
    %v194 = vshrl.u32 %v193, 7
    %v195 = vsub.s32 0, %v194
    %v196 = vrot.slane %v191, %v195
    %198 = vmatprep.subr.mxu0 0.0
    %199 = vmatpush1.msra.mxu0 %v175
    %200 = vmatprep.subr.mxu0 0.0
    %201 = vmatpush1.msra.mxu0 %v176
    %202 = vmatprep.subr.mxu0 0.0
    %203 = vmatpush1.msra.mxu0 %v177
    %204 = vmatprep.subr.mxu0 0.0
    %205 = vmatpush1.msra.mxu0 %v178
    %206 = vmatprep.subr.mxu0 0.0
    %207 = vmatpush1.msra.mxu0 %v179
    %208 = vmatprep.subr.mxu0 0.0
    %209 = vmatpush1.msra.mxu0 %v180
    %210 = vmatprep.subr.mxu0 0.0
    %211 = vmatpush1.msra.mxu0 %v181
    %212 = vmatprep.subr.mxu0 0.0
    %213 = vmatpush1.msra.mxu0 %v182
    %214 = vmatprep.subr.mxu0 0.0
    %215 = vmatpush1.msra.mxu0 %v183
    %216 = vmatprep.subr.mxu0 0.0
    %217 = vmatpush1.msra.mxu0 %v184
    %218 = vmatprep.subr.mxu0 0.0
    %219 = vmatpush1.msra.mxu0 %v185
    %220 = vmatprep.subr.mxu0 0.0
    %221 = vmatpush1.msra.mxu0 %v186
    %222 = vmatprep.subr.mxu0 0.0
    %223 = vmatpush1.msra.mxu0 %v187
    %224 = vmatprep.subr.mxu0 0.0
    %225 = vmatpush1.msra.mxu0 %v188
    %226 = vmatprep.subr.mxu0 0.0
    %227 = vmatpush1.msra.mxu0 %v189
    %228 = vmatprep.subr.mxu0 0.0
    %229 = vmatpush1.msra.mxu0 %v190
    %230 = vmatprep.subr.mxu0 0.0
    %231 = vmatpush1.msra.mxu0 0.0
    %232 = vmatprep.subr.mxu0 0.0
    %233 = vmatpush1.msra.mxu0 0.0
    %234 = vmatprep.subr.mxu0 0.0
    %235 = vmatpush1.msra.mxu0 0.0
    %236 = vmatprep.subr.mxu0 0.0
    %237 = vmatpush1.msra.mxu0 0.0
    %238 = vmatprep.subr.mxu0 0.0
    %239 = vmatpush1.msra.mxu0 0.0
    %240 = vmatprep.subr.mxu0 0.0
    %241 = vmatpush1.msra.mxu0 0.0
    %242 = vmatprep.subr.mxu0 0.0
    %243 = vmatpush1.msra.mxu0 0.0
    %244 = vmatprep.subr.mxu0 0.0
    %245 = vmatpush1.msra.mxu0 0.0
    %246 = vmatprep.subr.mxu0 0.0
    %247 = vmatpush1.msra.mxu0 0.0
    %248 = vmatprep.subr.mxu0 0.0
    %249 = vmatpush1.msra.mxu0 0.0
    %250 = vmatprep.subr.mxu0 0.0
    %251 = vmatpush1.msra.mxu0 0.0
    %252 = vmatprep.subr.mxu0 0.0
    %253 = vmatpush1.msra.mxu0 0.0
    %254 = vmatprep.subr.mxu0 0.0
    %255 = vmatpush1.msra.mxu0 0.0
    %256 = vmatprep.subr.mxu0 0.0
    %257 = vmatpush1.msra.mxu0 0.0
    %258 = vmatprep.subr.mxu0 0.0
    %259 = vmatpush1.msra.mxu0 0.0
    %260 = vmatprep.subr.mxu0 0.0
    %261 = vmatpush1.msra.mxu0 0.0
    %262 = vmatprep.mubr.f32.mxu0 0.0
    %263 = vmatmul.mubr.f32.gmra.mrb[0].mxu0 %v174
    %v264 = vpop.f32.mrb[0].mxu0
    %v265 = vadd.f32 %v196, %v264
    %v266 = vpop.f32.mrb[0].mxu0
    %267 = vdwg.mxu0
    %v268 = vmax.f32 %v265, 0.0
    %v269 = vld [vmem:[#allocation8] sm:$0xff]
    %v270 = vld [vmem:[#allocation8 + $0x8] sm:$0xff]
    %v271 = vld [vmem:[#allocation8 + $0x10] sm:$0xff]
    %v272 = vld [vmem:[#allocation8 + $0x18] sm:$0xff]
    %v273 = vld [vmem:[#allocation8 + $0x20] sm:$0xff]
    %v274 = vld [vmem:[#allocation8 + $0x28] sm:$0xff]
    %v275 = vld [vmem:[#allocation8 + $0x30] sm:$0xff]
    %v276 = vld [vmem:[#allocation8 + $0x38] sm:$0xff]
    %v277 = vld [vmem:[#allocation8 + $0x40] sm:$0xff]
    %v278 = vld [vmem:[#allocation8 + $0x48] sm:$0xff]
    %v279 = vld [vmem:[#allocation8 + $0x50] sm:$0xff]
    %v280 = vld [vmem:[#allocation8 + $0x58] sm:$0xff]
    %v281 = vld [vmem:[#allocation8 + $0x60] sm:$0xff]
    %v282 = vld [vmem:[#allocation8 + $0x68] sm:$0xff]
    %v283 = vld [vmem:[#allocation8 + $0x70] sm:$0xff]
    %v284 = vld [vmem:[#allocation8 + $0x78] sm:$0xff]
    %v285 = vld [vmem:[%s6] sm:$0x1]
    %v287 = vlaneseq
    %v288 = vshrl.u32 %v287, 7
    %v289 = vsub.s32 0, %v288
    %v290 = vrot.slane %v285, %v289
    %292 = vmatprep.subr.mxu0 0.0
    %293 = vmatpush1.msra.mxu0 %v269
    %294 = vmatprep.subr.mxu0 0.0
    %295 = vmatpush1.msra.mxu0 %v270
    %296 = vmatprep.subr.mxu0 0.0
    %297 = vmatpush1.msra.mxu0 %v271
    %298 = vmatprep.subr.mxu0 0.0
    %299 = vmatpush1.msra.mxu0 %v272
    %300 = vmatprep.subr.mxu0 0.0
    %301 = vmatpush1.msra.mxu0 %v273
    %302 = vmatprep.subr.mxu0 0.0
    %303 = vmatpush1.msra.mxu0 %v274
    %304 = vmatprep.subr.mxu0 0.0
    %305 = vmatpush1.msra.mxu0 %v275
    %306 = vmatprep.subr.mxu0 0.0
    %307 = vmatpush1.msra.mxu0 %v276
    %308 = vmatprep.subr.mxu0 0.0
    %309 = vmatpush1.msra.mxu0 %v277
    %310 = vmatprep.subr.mxu0 0.0
    %311 = vmatpush1.msra.mxu0 %v278
    %312 = vmatprep.subr.mxu0 0.0
    %313 = vmatpush1.msra.mxu0 %v279
    %314 = vmatprep.subr.mxu0 0.0
    %315 = vmatpush1.msra.mxu0 %v280
    %316 = vmatprep.subr.mxu0 0.0
    %317 = vmatpush1.msra.mxu0 %v281
    %318 = vmatprep.subr.mxu0 0.0
    %319 = vmatpush1.msra.mxu0 %v282
    %320 = vmatprep.subr.mxu0 0.0
    %321 = vmatpush1.msra.mxu0 %v283
    %322 = vmatprep.subr.mxu0 0.0
    %323 = vmatpush1.msra.mxu0 %v284
    %324 = vmatprep.subr.mxu0 0.0
    %325 = vmatpush1.msra.mxu0 0.0
    %326 = vmatprep.subr.mxu0 0.0
    %327 = vmatpush1.msra.mxu0 0.0
    %328 = vmatprep.subr.mxu0 0.0
    %329 = vmatpush1.msra.mxu0 0.0
    %330 = vmatprep.subr.mxu0 0.0
    %331 = vmatpush1.msra.mxu0 0.0
    %332 = vmatprep.subr.mxu0 0.0
    %333 = vmatpush1.msra.mxu0 0.0
    %334 = vmatprep.subr.mxu0 0.0
    %335 = vmatpush1.msra.mxu0 0.0
    %336 = vmatprep.subr.mxu0 0.0
    %337 = vmatpush1.msra.mxu0 0.0
    %338 = vmatprep.subr.mxu0 0.0
    %339 = vmatpush1.msra.mxu0 0.0
    %340 = vmatprep.subr.mxu0 0.0
    %341 = vmatpush1.msra.mxu0 0.0
    %342 = vmatprep.subr.mxu0 0.0
    %343 = vmatpush1.msra.mxu0 0.0
    %344 = vmatprep.subr.mxu0 0.0
    %345 = vmatpush1.msra.mxu0 0.0
    %346 = vmatprep.subr.mxu0 0.0
    %347 = vmatpush1.msra.mxu0 0.0
    %348 = vmatprep.subr.mxu0 0.0
    %349 = vmatpush1.msra.mxu0 0.0
    %350 = vmatprep.subr.mxu0 0.0
    %351 = vmatpush1.msra.mxu0 0.0
    %352 = vmatprep.subr.mxu0 0.0
    %353 = vmatpush1.msra.mxu0 0.0
    %354 = vmatprep.subr.mxu0 0.0
    %355 = vmatpush1.msra.mxu0 0.0
    %356 = vmatprep.mubr.f32.mxu0 0.0
    %357 = vmatmul.mubr.f32.gmra.mrb[0].mxu0 %v268
    %v358 = vpop.f32.mrb[0].mxu0
    %v359 = vadd.f32 %v290, %v358
    %v360 = vpop.f32.mrb[0].mxu0
    %361 = vdwg.mxu0
    %362 = vst [vmem:[#allocation10] sm:$0xff] %v359
    // Predicated region
    $region46: #{tpu_custom_call.1} parent=1 // pred_check
      _
    $region47: #{tpu_custom_call.1} parent=1 // pred_check_branch
      %364 = sbr.rel (0) target = $region49
    $region48: #{tpu_custom_call.1} parent=1 // pred_region
      %s366 = ssub.s32 128, 128
      %367 = vsyncadd [#allocation4], %s366
      %s369 = sshll.u32 [#allocation10], 4
      %s370 = int_to_ptr.vmem [resolvable:$true] %s369
      %372 = dma.vmem_to_hbm [thread:$0]  %s370, 128, %s7, [#allocation4]
    $region49: #{tpu_custom_call.1} parent=1 // pred_fallthru
      _
    // Predicated region
    $region50: #{tpu_custom_call.1} parent=1 // pred_check
      _
    $region51: #{tpu_custom_call.1} parent=1 // pred_check_branch
      %374 = sbr.rel (0) target = $region53
    $region52: #{tpu_custom_call.1} parent=1 // pred_region
      %375 = dma.done [#allocation4], 128
    $region53: #{tpu_custom_call.1} parent=1 // pred_fallthru
      _
    %376 = vsyncpa [#allocation3], 1
    %377 = vsyncpa [#allocation6], 1
    %378 = vsyncpa [#allocation9], 1
    %379 = vsyncpa [#allocation4], 1

// kernel: tpu_custom_call.1
$region0: #{tpu_custom_call.1}
  #allocation0 [shape = 'u32[]', space=smem, size = 0x4, offset = 0x4, fixed_abs, tag = 'smem constant byte address 0x4 - core index']
  #allocation1 [shape = 'u32[144,128]{1,0:T(1,128)}', space=vmem, size = 0x12000, scoped, tag = 'internal scratch']
  #allocation2 [shape = 'f32[8,128]{1,0:T(8,128)}', space=vmem, size = 0x1000, scoped, tag = 'scratch operand']
  %s0 = inlined_call_operand.hbm [shape: f32[8,128], index: 0, kind: input, shape index: {}]
  %s1 = inlined_call_operand.hbm [shape: f32[128,128], index: 1, kind: input, shape index: {}]
  %s2 = inlined_call_operand.vmem [shape: f32[1,128], index: 2, kind: input, shape index: {}]
  %s3 = inlined_call_operand.hbm [shape: f32[8,128], index: 3, kind: output, shape index: {}]
  %s4 = sld [smem:[#allocation0]]
  $region38: #{tpu_custom_call.1} parent=0
    _
  %s6 = ssub.s32 1, %s4
  %s7 = scalar_select 0, %s6, %s4
  $region1: #{tpu_custom_call.1} parent=0
    #allocation3 [shape = 'u8[4096]{0}', space=vmem, size = 0x1000, scoped, tag = 'input window, operand 0, single buffered']
    #allocation4 [shape = 's32[1]{0}', space=sflag, size = 0x4, scoped, tag = 'scoped memory for tpu_custom_call.1']
    #allocation5 [shape = 's32[1]{0}', space=sflag, size = 0x4, scoped, tag = 'scoped memory for tpu_custom_call.1']
    #allocation6 [shape = 'u8[65536]{0}', space=vmem, size = 0x10000, scoped, tag = 'input window, operand 1, single buffered']
    #allocation7 [shape = 's32[1]{0}', space=sflag, size = 0x4, scoped, tag = 'scoped memory for tpu_custom_call.1']
    #allocation8 [shape = 'u8[4096]{0}', space=vmem, size = 0x1000, scoped, tag = 'output window, operand 0, single buffered']
    %8 = vsyncpa [#allocation4], 0
    %9 = vsyncpa [#allocation7], 0
    %10 = vsyncpa [#allocation5], 0
    // Predicated region
    $region2: #{tpu_custom_call.1} parent=1 // pred_check
      _
    $region3: #{tpu_custom_call.1} parent=1 // pred_check_branch
      %12 = sbr.rel (0) target = $region5
    $region4: #{tpu_custom_call.1} parent=1 // pred_region
      %s14 = ssub.s32 128, 128
      %15 = vsyncadd [#allocation4], %s14
      %s17 = sshll.u32 [#allocation3], 4
      %s18 = int_to_ptr.vmem [resolvable:$true] %s17
      %20 = dma.hbm_to_vmem [thread:$0]  %s0, 128, %s18, [#allocation4]
    $region5: #{tpu_custom_call.1} parent=1 // pred_fallthru
      _
    // Predicated region
    $region6: #{tpu_custom_call.1} parent=1 // pred_check
      _
    $region7: #{tpu_custom_call.1} parent=1 // pred_check_branch
      %22 = sbr.rel (0) target = $region9
    $region8: #{tpu_custom_call.1} parent=1 // pred_region
      %s24 = ssub.s32 2048, 2048
      %25 = vsyncadd [#allocation7], %s24
      %s26 = sshll.u32 [#allocation6], 4
      %s27 = int_to_ptr.vmem [resolvable:$true] %s26
      %32 = dma.hbm_to_vmem [thread:$0]  %s1, 2048, %s27, [#allocation7], 128, 128, 8
    $region9: #{tpu_custom_call.1} parent=1 // pred_fallthru
      _
    // Predicated region
    $region10: #{tpu_custom_call.1} parent=1 // pred_check
      _
    $region11: #{tpu_custom_call.1} parent=1 // pred_check_branch
      %34 = sbr.rel (0) target = $region13
    $region12: #{tpu_custom_call.1} parent=1 // pred_region
      _
    $region13: #{tpu_custom_call.1} parent=1 // pred_fallthru
      _
    // Predicated region
    $region14: #{tpu_custom_call.1} parent=1 // pred_check
      _
    $region15: #{tpu_custom_call.1} parent=1 // pred_check_branch
      %36 = sbr.rel (0) target = $region17
    $region16: #{tpu_custom_call.1} parent=1 // pred_region
      %37 = dma.done [#allocation4], 128
    $region17: #{tpu_custom_call.1} parent=1 // pred_fallthru
      _
    // Predicated region
    $region18: #{tpu_custom_call.1} parent=1 // pred_check
      _
    $region19: #{tpu_custom_call.1} parent=1 // pred_check_branch
      %39 = sbr.rel (0) target = $region21
    $region20: #{tpu_custom_call.1} parent=1 // pred_region
      %40 = dma.done [#allocation7], 2048
    $region21: #{tpu_custom_call.1} parent=1 // pred_fallthru
      _
    %p41 = scmp.eq.s32.totalorder 0, 0
    // Predicated region
    $region22: #{tpu_custom_call.1} parent=1 // pred_check
      %p42 = pneg %p41
    $region23: #{tpu_custom_call.1} parent=1 // pred_check_branch
      %44 = sbr.rel (%p42) target = $region25
    $region24: #{tpu_custom_call.1} parent=1 // pred_region
      %45 = vst [vmem:[#allocation2] sm:$0xff] 0.0
    $region25: #{tpu_custom_call.1} parent=1 // pred_fallthru
      _
    %v46 = vld [vmem:[#allocation2] sm:$0xff]
    %v47 = vld [vmem:[#allocation3] sm:$0xff]
    %v48 = vld [vmem:[#allocation6] sm:$0xff]
    %v49 = vld [vmem:[#allocation6 + $0x8] sm:$0xff]
    %v50 = vld [vmem:[#allocation6 + $0x10] sm:$0xff]
    %v51 = vld [vmem:[#allocation6 + $0x18] sm:$0xff]
    %v52 = vld [vmem:[#allocation6 + $0x20] sm:$0xff]
    %v53 = vld [vmem:[#allocation6 + $0x28] sm:$0xff]
    %v54 = vld [vmem:[#allocation6 + $0x30] sm:$0xff]
    %v55 = vld [vmem:[#allocation6 + $0x38] sm:$0xff]
    %v56 = vld [vmem:[#allocation6 + $0x40] sm:$0xff]
    %v57 = vld [vmem:[#allocation6 + $0x48] sm:$0xff]
    %v58 = vld [vmem:[#allocation6 + $0x50] sm:$0xff]
    %v59 = vld [vmem:[#allocation6 + $0x58] sm:$0xff]
    %v60 = vld [vmem:[#allocation6 + $0x60] sm:$0xff]
    %v61 = vld [vmem:[#allocation6 + $0x68] sm:$0xff]
    %v62 = vld [vmem:[#allocation6 + $0x70] sm:$0xff]
    %v63 = vld [vmem:[#allocation6 + $0x78] sm:$0xff]
    %64 = vmatprep.subr.mxu0 0.0
    %65 = vmatpush1.msra.mxu0 %v48
    %66 = vmatprep.subr.mxu0 0.0
    %67 = vmatpush1.msra.mxu0 %v49
    %68 = vmatprep.subr.mxu0 0.0
    %69 = vmatpush1.msra.mxu0 %v50
    %70 = vmatprep.subr.mxu0 0.0
    %71 = vmatpush1.msra.mxu0 %v51
    %72 = vmatprep.subr.mxu0 0.0
    %73 = vmatpush1.msra.mxu0 %v52
    %74 = vmatprep.subr.mxu0 0.0
    %75 = vmatpush1.msra.mxu0 %v53
    %76 = vmatprep.subr.mxu0 0.0
    %77 = vmatpush1.msra.mxu0 %v54
    %78 = vmatprep.subr.mxu0 0.0
    %79 = vmatpush1.msra.mxu0 %v55
    %80 = vmatprep.subr.mxu0 0.0
    %81 = vmatpush1.msra.mxu0 %v56
    %82 = vmatprep.subr.mxu0 0.0
    %83 = vmatpush1.msra.mxu0 %v57
    %84 = vmatprep.subr.mxu0 0.0
    %85 = vmatpush1.msra.mxu0 %v58
    %86 = vmatprep.subr.mxu0 0.0
    %87 = vmatpush1.msra.mxu0 %v59
    %88 = vmatprep.subr.mxu0 0.0
    %89 = vmatpush1.msra.mxu0 %v60
    %90 = vmatprep.subr.mxu0 0.0
    %91 = vmatpush1.msra.mxu0 %v61
    %92 = vmatprep.subr.mxu0 0.0
    %93 = vmatpush1.msra.mxu0 %v62
    %94 = vmatprep.subr.mxu0 0.0
    %95 = vmatpush1.msra.mxu0 %v63
    %96 = vmatprep.subr.mxu0 0.0
    %97 = vmatpush1.msra.mxu0 0.0
    %98 = vmatprep.subr.mxu0 0.0
    %99 = vmatpush1.msra.mxu0 0.0
    %100 = vmatprep.subr.mxu0 0.0
    %101 = vmatpush1.msra.mxu0 0.0
    %102 = vmatprep.subr.mxu0 0.0
    %103 = vmatpush1.msra.mxu0 0.0
    %104 = vmatprep.subr.mxu0 0.0
    %105 = vmatpush1.msra.mxu0 0.0
    %106 = vmatprep.subr.mxu0 0.0
    %107 = vmatpush1.msra.mxu0 0.0
    %108 = vmatprep.subr.mxu0 0.0
    %109 = vmatpush1.msra.mxu0 0.0
    %110 = vmatprep.subr.mxu0 0.0
    %111 = vmatpush1.msra.mxu0 0.0
    %112 = vmatprep.subr.mxu0 0.0
    %113 = vmatpush1.msra.mxu0 0.0
    %114 = vmatprep.subr.mxu0 0.0
    %115 = vmatpush1.msra.mxu0 0.0
    %116 = vmatprep.subr.mxu0 0.0
    %117 = vmatpush1.msra.mxu0 0.0
    %118 = vmatprep.subr.mxu0 0.0
    %119 = vmatpush1.msra.mxu0 0.0
    %120 = vmatprep.subr.mxu0 0.0
    %121 = vmatpush1.msra.mxu0 0.0
    %122 = vmatprep.subr.mxu0 0.0
    %123 = vmatpush1.msra.mxu0 0.0
    %124 = vmatprep.subr.mxu0 0.0
    %125 = vmatpush1.msra.mxu0 0.0
    %126 = vmatprep.subr.mxu0 0.0
    %127 = vmatpush1.msra.mxu0 0.0
    %128 = vmatprep.mubr.f32.mxu0 0.0
    %129 = vmatmul.mubr.f32.gmra.mrb[0].mxu0 %v47
    %v130 = vpop.f32.mrb[0].mxu0
    %v131 = vadd.f32 0.0, %v130
    %v132 = vpop.f32.mrb[0].mxu0
    %133 = vdwg.mxu0
    %v134 = vadd.f32 %v46, %v131
    %135 = vst [vmem:[#allocation2] sm:$0xff] %v134
    // Predicated region
    $region26: #{tpu_custom_call.1} parent=1 // pred_check
      %p136 = pneg %p41
    $region27: #{tpu_custom_call.1} parent=1 // pred_check_branch
      %138 = sbr.rel (%p136) target = $region29
    $region28: #{tpu_custom_call.1} parent=1 // pred_region
      %v139 = vld [vmem:[#allocation2] sm:$0xff]
      %v140 = vld [vmem:[%s2] sm:$0x1]
      %v142 = vlaneseq
      %v143 = vshrl.u32 %v142, 7
      %v144 = vsub.s32 0, %v143
      %v145 = vrot.slane %v140, %v144
      %v147 = vadd.f32 %v139, %v145
      %v148 = vmax.f32 %v147, 0.0
      %149 = vst [vmem:[#allocation8] sm:$0xff] %v148
    $region29: #{tpu_custom_call.1} parent=1 // pred_fallthru
      _
    // Predicated region
    $region30: #{tpu_custom_call.1} parent=1 // pred_check
      _
    $region31: #{tpu_custom_call.1} parent=1 // pred_check_branch
      %151 = sbr.rel (0) target = $region33
    $region32: #{tpu_custom_call.1} parent=1 // pred_region
      %s153 = ssub.s32 128, 128
      %154 = vsyncadd [#allocation5], %s153
      %s156 = sshll.u32 [#allocation8], 4
      %s157 = int_to_ptr.vmem [resolvable:$true] %s156
      %159 = dma.vmem_to_hbm [thread:$0]  %s157, 128, %s3, [#allocation5]
    $region33: #{tpu_custom_call.1} parent=1 // pred_fallthru
      _
    // Predicated region
    $region34: #{tpu_custom_call.1} parent=1 // pred_check
      _
    $region35: #{tpu_custom_call.1} parent=1 // pred_check_branch
      %161 = sbr.rel (0) target = $region37
    $region36: #{tpu_custom_call.1} parent=1 // pred_region
      %162 = dma.done [#allocation5], 128
    $region37: #{tpu_custom_call.1} parent=1 // pred_fallthru
      _
    %163 = vsyncpa [#allocation4], 1
    %164 = vsyncpa [#allocation7], 1
    %165 = vsyncpa [#allocation5], 1

</llo_original>
